<compile_context>
chip_gen: v6e
topology: v6e:2x2x1
jax: 0.10.0
libtpu: 0.0.40
codegen_flags: <defaults>
</compile_context>

<pallas_src>
import functools
import math

import numpy as np
import jax
import jax.numpy as jnp
from jax.experimental import pallas as pl
from jax.experimental.pallas import tpu as pltpu


def _layer_norm(x, g, b, eps=1e-6):
    mu = jnp.mean(x, axis=-1, keepdims=True)
    var = jnp.mean((x - mu) ** 2, axis=-1, keepdims=True)
    return (x - mu) * jax.lax.rsqrt(var + eps) * g + b


# ----------------------------------------------------------------------------
# Kernel: one EncoderLayer for a single batch element.
# ----------------------------------------------------------------------------
def _encoder_layer_kernel(
    x_ref,
    wq_ref, bq_ref, wk_ref, bk_ref, wv_ref, bv_ref,
    e_t_ref,
    wo_ref, bo_ref,
    w1_ref, b1_ref, w2_ref, b2_ref,
    g1_ref, be1_ref, g2_ref, be2_ref,
    out_ref, attn_ref,
    cat_ref, skew_ref,
    *, num_heads, dh,
):
    f32 = jnp.float32
    x = x_ref[0]                                   # [L, D] in compute dtype
    L, D = x.shape
    cdt = x.dtype

    # ---- fused, lane-dense QKV projections (MXU, f32 accumulation) ----------
    q = jnp.dot(x, wq_ref[...], preferred_element_type=f32) + bq_ref[...]
    k = jnp.dot(x, wk_ref[...], preferred_element_type=f32) + bk_ref[...]
    v = jnp.dot(x, wv_ref[...], preferred_element_type=f32) + bv_ref[...]
    # fold 1/sqrt(dh) into q once: scales both QK^T and Srel.
    q = q * (1.0 / math.sqrt(dh))

    row = jax.lax.broadcasted_iota(jnp.int32, (L, L), 0)
    col = jax.lax.broadcasted_iota(jnp.int32, (L, L), 1)
    left_shift = (L - 1) - row                     # per-row rotation for the MT skew

    for head in range(num_heads):                  # static unroll (h is small)
        sl = slice(head * dh, (head + 1) * dh)
        qh = q[:, sl].astype(cdt)                  # [L, dh]
        kh = k[:, sl].astype(cdt)
        vh = v[:, sl].astype(cdt)

        # relative logits on the MXU:  QE[i, m] = q[i] . E_used[m]      -> [L, L]
        qe = jnp.dot(qh, e_t_ref[...], preferred_element_type=f32)

        # Music-Transformer skew: Srel[i, j] = QE[i, j + (L-1-i)] for j <= i else 0.
        # Per-row circular left-rotation via a log2(L) barrel shifter staged through
        # VMEM (static slices/stores only), then a lower-triangular mask.
        srel = qe
        b = 1
        while b < L:
            skew_ref[:, : L - b] = srel[:, b:]
            skew_ref[:, L - b:] = srel[:, :b]
            srel = jnp.where((left_shift & b) != 0, skew_ref[...], srel)
            b *= 2
        srel = jnp.where(col <= row, srel, 0.0)

        # content logits Q K^T (contract the head dim of both operands)   -> [L, L]
        qkt = jax.lax.dot_general(qh, kh, (((1,), (1,)), ((), ())),
                                  preferred_element_type=f32)

        logits = qkt + srel                        # mask=None in EncoderLayer.forward
        mx = jnp.max(logits, axis=-1, keepdims=True)
        p = jnp.exp(logits - mx)
        inv = pl.reciprocal(jnp.sum(p, axis=-1, keepdims=True), approx=True)
        w = (p * inv).astype(cdt)
        # attn output block is VMEM-resident; per-head writes, one DMA writeback.
        attn_ref[0, head] = w

        ah = jnp.dot(w, vh, preferred_element_type=f32)                 # [L, dh]
        cat_ref[:, sl] = ah.astype(cdt)            # concatenate heads in VMEM scratch

    # ---- single lane-dense output projection over all heads -----------------
    fc = jnp.dot(cat_ref[...], wo_ref[...], preferred_element_type=f32) + bo_ref[...]

    # dropout1 -> identity (inference); residual + layernorm1 (f32)
    h1 = fc + x.astype(f32)
    out1 = _layer_norm(h1, g1_ref[...], be1_ref[...])

    # FFN: relu(out1 @ W1 + b1) @ W2 + b2   (compute-dtype operands, f32 accumulation)
    f = jnp.dot(out1.astype(cdt), w1_ref[...], preferred_element_type=f32) + b1_ref[...]
    f = jnp.maximum(f, 0.0).astype(cdt)
    f = jnp.dot(f, w2_ref[...], preferred_element_type=f32) + b2_ref[...]

    # dropout2 -> identity; residual + layernorm2 (f32)
    out2 = _layer_norm(out1 + f, g2_ref[...], be2_ref[...])
    out_ref[0] = out2.astype(out_ref.dtype)


# ----------------------------------------------------------------------------
# Wrapper: parameter packing + pallas_call.
# ----------------------------------------------------------------------------
def encoder_layer(x, params, *, num_heads, compute_dtype=jnp.bfloat16):
    B, L, D = x.shape
    dh = D // num_heads
    cdt = compute_dtype
    f32 = jnp.float32

    max_seq = params["E"].shape[0]
    assert L <= max_seq, "sequence length must not exceed max_seq"
    # E rows used by _get_left_embedding, transposed so the kernel does q @ E^T directly.
    e_t = params["E"][max_seq - L:, :].T.astype(cdt)                 # [dh, L]

    def c(a):
        return a.astype(cdt)

    def r2(a):
        return a.reshape(1, -1).astype(f32)

    weight_args = (
        c(params["wq"]), r2(params["bq"]),
        c(params["wk"]), r2(params["bk"]),
        c(params["wv"]), r2(params["bv"]),
        e_t,
        c(params["wo"]), r2(params["bo"]),
        c(params["w1"]), r2(params["b1"]),
        c(params["w2"]), r2(params["b2"]),
        r2(params["g1"]), r2(params["beta1"]),
        r2(params["g2"]), r2(params["beta2"]),
    )

    def rep_spec(a):
        zeros = (0,) * a.ndim
        return pl.BlockSpec(a.shape, lambda b, z=zeros: z)

    in_specs = [pl.BlockSpec((1, L, D), lambda b: (b, 0, 0))]
    in_specs += [rep_spec(a) for a in weight_args]

    out_specs = (
        pl.BlockSpec((1, L, D), lambda b: (b, 0, 0)),
        pl.BlockSpec((1, num_heads, L, L), lambda b: (b, 0, 0, 0)),
    )
    out_shape = (
        jax.ShapeDtypeStruct((B, L, D), f32),
        jax.ShapeDtypeStruct((B, num_heads, L, L), cdt),
    )
    scratch_shapes = [
        pltpu.VMEM((L, D), cdt),        # per-head attention outputs, concatenated
        pltpu.VMEM((L, L), f32),        # barrel-shifter staging for the MT skew
    ]

    # explicit VMEM budget from actual block sizes (double-buffered) + scratch + slack
    def nbytes(a):
        return int(np.prod(a.shape)) * a.dtype.itemsize

    item_c = jnp.dtype(cdt).itemsize
    block_bytes = (
        L * D * item_c                                  # x block
        + sum(nbytes(a) for a in weight_args)           # replicated weights
        + L * D * 4                                     # out block (f32)
        + num_heads * L * L * item_c                    # attn block
    )
    scratch_bytes = L * D * item_c + L * L * 4
    vmem_limit = int(min(64 * 2**20,
                         max(32 * 2**20, 2 * block_bytes + scratch_bytes + (4 << 20))))

    kernel = functools.partial(_encoder_layer_kernel, num_heads=num_heads, dh=dh)
    return pl.pallas_call(
        kernel,
        grid=(B,),
        in_specs=in_specs,
        out_specs=out_specs,
        out_shape=out_shape,
        scratch_shapes=scratch_shapes,
        compiler_params=pltpu.CompilerParams(
            dimension_semantics=("parallel",),
            vmem_limit_bytes=vmem_limit,
        ),
    )(x.astype(cdt), *weight_args)


# ----------------------------------------------------------------------------
# Pure-JAX reference (mirrors the PyTorch forward literally, incl. pad/reshape skew).
# ----------------------------------------------------------------------------
def ref_encoder_layer(x, params, num_heads):
    B, L, D = x.shape
    dh = D // num_heads
    q = (x @ params["wq"] + params["bq"]).reshape(B, L, num_heads, dh).transpose(0, 2, 1, 3)
    k = (x @ params["wk"] + params["bk"]).reshape(B, L, num_heads, dh).transpose(0, 2, 1, 3)
    v = (x @ params["wv"] + params["bv"]).reshape(B, L, num_heads, dh).transpose(0, 2, 1, 3)
    E = params["E"][params["E"].shape[0] - L:, :]
    qe = jnp.einsum("bhld,md->bhlm", q, E)
    rows = jnp.arange(L)[:, None]
    cols = jnp.arange(L)[None, :]
    keep = (cols >= (L - 1 - rows)).astype(qe.dtype)          # ~utils.sequence_mask
    qe = qe * keep
    padded = jnp.pad(qe, ((0, 0), (0, 0), (0, 0), (1, 0)))
    srel = padded.reshape(B, num_heads, L + 1, L)[:, :, 1:, :]
    logits = (jnp.einsum("bhld,bhmd->bhlm", q, k) + srel) / math.sqrt(dh)
    w = jax.nn.softmax(logits, axis=-1)
    attn = jnp.einsum("bhlm,bhmd->bhld", w, v).transpose(0, 2, 1, 3).reshape(B, L, D)
    attn = attn @ params["wo"] + params["bo"]
    out1 = _layer_norm(attn + x, params["g1"], params["beta1"])
    f = jax.nn.relu(out1 @ params["w1"] + params["b1"]) @ params["w2"] + params["b2"]
    out2 = _layer_norm(out1 + f, params["g2"], params["beta2"])
    return out2, w


# ----------------------------------------------------------------------------
# Deterministic synthetic parameters.
# ----------------------------------------------------------------------------
def init_params(key, d_model, num_heads, max_seq):
    d = d_model
    dh = d // num_heads
    kiter = iter(jax.random.split(key, 24))

    def nrm(shape, scale=1.0):
        return (scale * jax.random.normal(next(kiter), shape)).astype(jnp.float32)

    return {
        "wq": nrm((d, d), 1 / math.sqrt(d)), "bq": nrm((d,), 0.02),
        "wk": nrm((d, d), 1 / math.sqrt(d)), "bk": nrm((d,), 0.02),
        "wv": nrm((d, d), 1 / math.sqrt(d)), "bv": nrm((d,), 0.02),
        "wo": nrm((d, d), 1 / math.sqrt(d)), "bo": nrm((d,), 0.02),
        "E":  nrm((max_seq, dh)),
        "w1": nrm((d, d // 2), 1 / math.sqrt(d)), "b1": nrm((d // 2,), 0.02),
        "w2": nrm((d // 2, d), 1 / math.sqrt(d // 2)), "b2": nrm((d,), 0.02),
        "g1": jnp.ones((d,), jnp.float32), "beta1": jnp.zeros((d,), jnp.float32),
        "g2": jnp.ones((d,), jnp.float32), "beta2": jnp.zeros((d,), jnp.float32),
    }


if __name__ == "__main__":
    # EncoderLayer(d_model=128, h=2, max_seq=32) at small shapes: B=2, L=8 (dh=64).
    d_model, num_heads, max_seq = 128, 2, 32
    B, L = 2, 8

    key = jax.random.PRNGKey(0)
    pkey, xkey = jax.random.split(key)
    params = init_params(pkey, d_model, num_heads, max_seq)
    x = jax.random.normal(xkey, (B, L, d_model), dtype=jnp.float32)

    ref_out, ref_w = ref_encoder_layer(x, params, num_heads)

    # f32 compute path: strict structural check (skew, masking, softmax, LN, FFN).
    out32, w32 = encoder_layer(x, params, num_heads=num_heads, compute_dtype=jnp.float32)
    out32 = jax.block_until_ready(out32)
    w32 = jax.block_until_ready(w32)
    np.testing.assert_allclose(np.asarray(out32), np.asarray(ref_out), rtol=2e-2, atol=2e-2)
    np.testing.assert_allclose(np.asarray(w32), np.asarray(ref_w), rtol=2e-2, atol=2e-2)

    # bf16-operand / f32-accumulation path (MXU-friendly production config); loose
    # tolerance purely for bf16 quantization of inputs/weights/attention probs.
    out16, w16 = encoder_layer(x, params, num_heads=num_heads, compute_dtype=jnp.bfloat16)
    out16 = jax.block_until_ready(out16)
    w16 = jax.block_until_ready(w16)
    np.testing.assert_allclose(np.asarray(out16), np.asarray(ref_out), rtol=1e-1, atol=1e-1)
    np.testing.assert_allclose(np.asarray(w16).astype(np.float32), np.asarray(ref_w),
                               rtol=1e-1, atol=1e-1)

    print("KERNEL_OK")
</pallas_src>

<mosaic_0001>
module attributes {stable_mosaic.version = 11 : i64} {
  func.func @_encoder_layer_kernel(%arg0: i32, %arg1: memref<1x8x128xf32, #tpu.memory_space<vmem>>, %arg2: memref<128x128xf32, #tpu.memory_space<vmem>>, %arg3: memref<1x128xf32, #tpu.memory_space<vmem>>, %arg4: memref<128x128xf32, #tpu.memory_space<vmem>>, %arg5: memref<1x128xf32, #tpu.memory_space<vmem>>, %arg6: memref<128x128xf32, #tpu.memory_space<vmem>>, %arg7: memref<1x128xf32, #tpu.memory_space<vmem>>, %arg8: memref<64x8xf32, #tpu.memory_space<vmem>>, %arg9: memref<128x128xf32, #tpu.memory_space<vmem>>, %arg10: memref<1x128xf32, #tpu.memory_space<vmem>>, %arg11: memref<128x64xf32, #tpu.memory_space<vmem>>, %arg12: memref<1x64xf32, #tpu.memory_space<vmem>>, %arg13: memref<64x128xf32, #tpu.memory_space<vmem>>, %arg14: memref<1x128xf32, #tpu.memory_space<vmem>>, %arg15: memref<1x128xf32, #tpu.memory_space<vmem>>, %arg16: memref<1x128xf32, #tpu.memory_space<vmem>>, %arg17: memref<1x128xf32, #tpu.memory_space<vmem>>, %arg18: memref<1x128xf32, #tpu.memory_space<vmem>>, %arg19: memref<1x8x128xf32, #tpu.memory_space<vmem>>, %arg20: memref<1x2x8x8xf32, #tpu.memory_space<vmem>>, %arg21: memref<8x128xf32, #tpu.memory_space<vmem>>, %arg22: memref<8x8xf32, #tpu.memory_space<vmem>>) attributes {dimension_semantics = [#tpu.dimension_semantics<parallel>], iteration_bounds = array<i64: 2>, scalar_prefetch = 0 : i64, scratch_operands = 2 : i64, tpu.core_type = #tpu.core_type<tc>, window_params = [{transform_indices = @transform_0, window_bounds = array<i64: 1, 8, 128>}, {pipeline_mode = #tpu.pipeline_mode<synchronous>, transform_indices = @transform_1, window_bounds = array<i64: 128, 128>}, {pipeline_mode = #tpu.pipeline_mode<synchronous>, transform_indices = @transform_2, window_bounds = array<i64: 1, 128>}, {pipeline_mode = #tpu.pipeline_mode<synchronous>, transform_indices = @transform_3, window_bounds = array<i64: 128, 128>}, {pipeline_mode = #tpu.pipeline_mode<synchronous>, transform_indices = @transform_4, window_bounds = array<i64: 1, 128>}, {pipeline_mode = #tpu.pipeline_mode<synchronous>, transform_indices = @transform_5, window_bounds = array<i64: 128, 128>}, {pipeline_mode = #tpu.pipeline_mode<synchronous>, transform_indices = @transform_6, window_bounds = array<i64: 1, 128>}, {pipeline_mode = #tpu.pipeline_mode<synchronous>, transform_indices = @transform_7, window_bounds = array<i64: 64, 8>}, {pipeline_mode = #tpu.pipeline_mode<synchronous>, transform_indices = @transform_8, window_bounds = array<i64: 128, 128>}, {pipeline_mode = #tpu.pipeline_mode<synchronous>, transform_indices = @transform_9, window_bounds = array<i64: 1, 128>}, {pipeline_mode = #tpu.pipeline_mode<synchronous>, transform_indices = @transform_10, window_bounds = array<i64: 128, 64>}, {pipeline_mode = #tpu.pipeline_mode<synchronous>, transform_indices = @transform_11, window_bounds = array<i64: 1, 64>}, {pipeline_mode = #tpu.pipeline_mode<synchronous>, transform_indices = @transform_12, window_bounds = array<i64: 64, 128>}, {pipeline_mode = #tpu.pipeline_mode<synchronous>, transform_indices = @transform_13, window_bounds = array<i64: 1, 128>}, {pipeline_mode = #tpu.pipeline_mode<synchronous>, transform_indices = @transform_14, window_bounds = array<i64: 1, 128>}, {pipeline_mode = #tpu.pipeline_mode<synchronous>, transform_indices = @transform_15, window_bounds = array<i64: 1, 128>}, {pipeline_mode = #tpu.pipeline_mode<synchronous>, transform_indices = @transform_16, window_bounds = array<i64: 1, 128>}, {pipeline_mode = #tpu.pipeline_mode<synchronous>, transform_indices = @transform_17, window_bounds = array<i64: 1, 128>}, {transform_indices = @transform_18, window_bounds = array<i64: 1, 8, 128>}, {transform_indices = @transform_19, window_bounds = array<i64: 1, 2, 8, 8>}]} {
    %c0 = arith.constant 0 : index
    %c0_0 = arith.constant 0 : index
    %c0_1 = arith.constant 0 : index
    %0 = vector.load %arg1[%c0, %c0_0, %c0_1] : memref<1x8x128xf32, #tpu.memory_space<vmem>>, vector<1x8x128xf32>
    %1 = vector.shape_cast %0 : vector<1x8x128xf32> to vector<8x128xf32>
    %c0_2 = arith.constant 0 : index
    %c0_3 = arith.constant 0 : index
    %2 = vector.load %arg2[%c0_2, %c0_3] : memref<128x128xf32, #tpu.memory_space<vmem>>, vector<128x128xf32>
    %cst = arith.constant dense<0.000000e+00> : vector<8x128xf32>
    %3 = tpu.matmul %1, %2, %cst {dimension_numbers = #tpu.dot_dimension_numbers<[1], [0], [0], [1], [0, 0, 1, 1], [], []>} : vector<8x128xf32>, vector<128x128xf32>, vector<8x128xf32> -> vector<8x128xf32>
    %c0_4 = arith.constant 0 : index
    %c0_5 = arith.constant 0 : index
    %4 = vector.load %arg3[%c0_4, %c0_5] : memref<1x128xf32, #tpu.memory_space<vmem>>, vector<1x128xf32>
    %5 = vector.broadcast %4 : vector<1x128xf32> to vector<8x128xf32>
    %6 = arith.addf %3, %5 : vector<8x128xf32>
    %c0_6 = arith.constant 0 : index
    %c0_7 = arith.constant 0 : index
    %7 = vector.load %arg4[%c0_6, %c0_7] : memref<128x128xf32, #tpu.memory_space<vmem>>, vector<128x128xf32>
    %cst_8 = arith.constant dense<0.000000e+00> : vector<8x128xf32>
    %8 = tpu.matmul %1, %7, %cst_8 {dimension_numbers = #tpu.dot_dimension_numbers<[1], [0], [0], [1], [0, 0, 1, 1], [], []>} : vector<8x128xf32>, vector<128x128xf32>, vector<8x128xf32> -> vector<8x128xf32>
    %c0_9 = arith.constant 0 : index
    %c0_10 = arith.constant 0 : index
    %9 = vector.load %arg5[%c0_9, %c0_10] : memref<1x128xf32, #tpu.memory_space<vmem>>, vector<1x128xf32>
    %10 = vector.broadcast %9 : vector<1x128xf32> to vector<8x128xf32>
    %11 = arith.addf %8, %10 : vector<8x128xf32>
    %c0_11 = arith.constant 0 : index
    %c0_12 = arith.constant 0 : index
    %12 = vector.load %arg6[%c0_11, %c0_12] : memref<128x128xf32, #tpu.memory_space<vmem>>, vector<128x128xf32>
    %cst_13 = arith.constant dense<0.000000e+00> : vector<8x128xf32>
    %13 = tpu.matmul %1, %12, %cst_13 {dimension_numbers = #tpu.dot_dimension_numbers<[1], [0], [0], [1], [0, 0, 1, 1], [], []>} : vector<8x128xf32>, vector<128x128xf32>, vector<8x128xf32> -> vector<8x128xf32>
    %c0_14 = arith.constant 0 : index
    %c0_15 = arith.constant 0 : index
    %14 = vector.load %arg7[%c0_14, %c0_15] : memref<1x128xf32, #tpu.memory_space<vmem>>, vector<1x128xf32>
    %15 = vector.broadcast %14 : vector<1x128xf32> to vector<8x128xf32>
    %16 = arith.addf %13, %15 : vector<8x128xf32>
    %cst_16 = arith.constant 1.250000e-01 : f32
    %17 = vector.broadcast %cst_16 : f32 to vector<8x128xf32>
    %18 = arith.mulf %6, %17 : vector<8x128xf32>
    %19 = tpu.iota {dimensions = array<i32: 0>} : vector<8x8xi32>
    %20 = tpu.iota {dimensions = array<i32: 1>} : vector<8x8xi32>
    %c7_i32 = arith.constant 7 : i32
    %21 = vector.broadcast %c7_i32 : i32 to vector<8x8xi32>
    %22 = arith.subi %21, %19 : vector<8x8xi32>
    %23 = vector.extract_strided_slice %18 {offsets = [0, 0], sizes = [8, 64], strides = [1, 1]} : vector<8x128xf32> to vector<8x64xf32>
    %24 = vector.extract_strided_slice %11 {offsets = [0, 0], sizes = [8, 64], strides = [1, 1]} : vector<8x128xf32> to vector<8x64xf32>
    %25 = vector.extract_strided_slice %16 {offsets = [0, 0], sizes = [8, 64], strides = [1, 1]} : vector<8x128xf32> to vector<8x64xf32>
    %c0_17 = arith.constant 0 : index
    %c0_18 = arith.constant 0 : index
    %26 = vector.load %arg8[%c0_17, %c0_18] : memref<64x8xf32, #tpu.memory_space<vmem>>, vector<64x8xf32>
    %cst_19 = arith.constant dense<0.000000e+00> : vector<8x8xf32>
    %27 = tpu.matmul %23, %26, %cst_19 {dimension_numbers = #tpu.dot_dimension_numbers<[1], [0], [0], [1], [0, 0, 1, 1], [], []>} : vector<8x64xf32>, vector<64x8xf32>, vector<8x8xf32> -> vector<8x8xf32>
    %28 = vector.extract_strided_slice %27 {offsets = [0, 1], sizes = [8, 7], strides = [1, 1]} : vector<8x8xf32> to vector<8x7xf32>
    %c0_20 = arith.constant 0 : index
    %c0_21 = arith.constant 0 : index
    %29 = vector.load %arg22[%c0_20, %c0_21] : memref<8x8xf32, #tpu.memory_space<vmem>>, vector<8x7xf32>
    tpu.vector_store %arg22[%c0_20, %c0_21], %28 {strides = array<i32>} : memref<8x8xf32, #tpu.memory_space<vmem>>, vector<8x7xf32>,
    %30 = vector.extract_strided_slice %27 {offsets = [0, 0], sizes = [8, 1], strides = [1, 1]} : vector<8x8xf32> to vector<8x1xf32>
    %c0_22 = arith.constant 0 : index
    %c7 = arith.constant 7 : index
    %31 = vector.load %arg22[%c0_22, %c7] : memref<8x8xf32, #tpu.memory_space<vmem>>, vector<8x1xf32>
    tpu.vector_store %arg22[%c0_22, %c7], %30 {strides = array<i32>} : memref<8x8xf32, #tpu.memory_space<vmem>>, vector<8x1xf32>,
    %c1_i32 = arith.constant 1 : i32
    %32 = vector.broadcast %c1_i32 : i32 to vector<8x8xi32>
    %33 = arith.andi %22, %32 : vector<8x8xi32>
    %c0_i32 = arith.constant 0 : i32
    %34 = vector.broadcast %c0_i32 : i32 to vector<8x8xi32>
    %35 = arith.cmpi ne, %33, %34 : vector<8x8xi32>
    %c0_23 = arith.constant 0 : index
    %c0_24 = arith.constant 0 : index
    %36 = vector.load %arg22[%c0_23, %c0_24] : memref<8x8xf32, #tpu.memory_space<vmem>>, vector<8x8xf32>
    %37 = arith.select %35, %36, %27 : vector<8x8xi1>, vector<8x8xf32>
    %38 = vector.extract_strided_slice %37 {offsets = [0, 2], sizes = [8, 6], strides = [1, 1]} : vector<8x8xf32> to vector<8x6xf32>
    %c0_25 = arith.constant 0 : index
    %c0_26 = arith.constant 0 : index
    %39 = vector.load %arg22[%c0_25, %c0_26] : memref<8x8xf32, #tpu.memory_space<vmem>>, vector<8x6xf32>
    tpu.vector_store %arg22[%c0_25, %c0_26], %38 {strides = array<i32>} : memref<8x8xf32, #tpu.memory_space<vmem>>, vector<8x6xf32>,
    %40 = vector.extract_strided_slice %37 {offsets = [0, 0], sizes = [8, 2], strides = [1, 1]} : vector<8x8xf32> to vector<8x2xf32>
    %c0_27 = arith.constant 0 : index
    %c6 = arith.constant 6 : index
    %41 = vector.load %arg22[%c0_27, %c6] : memref<8x8xf32, #tpu.memory_space<vmem>>, vector<8x2xf32>
    tpu.vector_store %arg22[%c0_27, %c6], %40 {strides = array<i32>} : memref<8x8xf32, #tpu.memory_space<vmem>>, vector<8x2xf32>,
    %c2_i32 = arith.constant 2 : i32
    %42 = vector.broadcast %c2_i32 : i32 to vector<8x8xi32>
    %43 = arith.andi %22, %42 : vector<8x8xi32>
    %c0_i32_28 = arith.constant 0 : i32
    %44 = vector.broadcast %c0_i32_28 : i32 to vector<8x8xi32>
    %45 = arith.cmpi ne, %43, %44 : vector<8x8xi32>
    %c0_29 = arith.constant 0 : index
    %c0_30 = arith.constant 0 : index
    %46 = vector.load %arg22[%c0_29, %c0_30] : memref<8x8xf32, #tpu.memory_space<vmem>>, vector<8x8xf32>
    %47 = arith.select %45, %46, %37 : vector<8x8xi1>, vector<8x8xf32>
    %48 = vector.extract_strided_slice %47 {offsets = [0, 4], sizes = [8, 4], strides = [1, 1]} : vector<8x8xf32> to vector<8x4xf32>
    %c0_31 = arith.constant 0 : index
    %c0_32 = arith.constant 0 : index
    %49 = vector.load %arg22[%c0_31, %c0_32] : memref<8x8xf32, #tpu.memory_space<vmem>>, vector<8x4xf32>
    tpu.vector_store %arg22[%c0_31, %c0_32], %48 {strides = array<i32>} : memref<8x8xf32, #tpu.memory_space<vmem>>, vector<8x4xf32>,
    %50 = vector.extract_strided_slice %47 {offsets = [0, 0], sizes = [8, 4], strides = [1, 1]} : vector<8x8xf32> to vector<8x4xf32>
    %c0_33 = arith.constant 0 : index
    %c4 = arith.constant 4 : index
    %51 = vector.load %arg22[%c0_33, %c4] : memref<8x8xf32, #tpu.memory_space<vmem>>, vector<8x4xf32>
    tpu.vector_store %arg22[%c0_33, %c4], %50 {strides = array<i32>} : memref<8x8xf32, #tpu.memory_space<vmem>>, vector<8x4xf32>,
    %c4_i32 = arith.constant 4 : i32
    %52 = vector.broadcast %c4_i32 : i32 to vector<8x8xi32>
    %53 = arith.andi %22, %52 : vector<8x8xi32>
    %c0_i32_34 = arith.constant 0 : i32
    %54 = vector.broadcast %c0_i32_34 : i32 to vector<8x8xi32>
    %55 = arith.cmpi ne, %53, %54 : vector<8x8xi32>
    %c0_35 = arith.constant 0 : index
    %c0_36 = arith.constant 0 : index
    %56 = vector.load %arg22[%c0_35, %c0_36] : memref<8x8xf32, #tpu.memory_space<vmem>>, vector<8x8xf32>
    %57 = arith.select %55, %56, %47 : vector<8x8xi1>, vector<8x8xf32>
    %58 = arith.cmpi sle, %20, %19 : vector<8x8xi32>
    %cst_37 = arith.constant 0.000000e+00 : f32
    %59 = vector.broadcast %cst_37 : f32 to vector<8x8xf32>
    %60 = arith.select %58, %57, %59 : vector<8x8xi1>, vector<8x8xf32>
    %cst_38 = arith.constant dense<0.000000e+00> : vector<8x8xf32>
    %61 = tpu.matmul %23, %24, %cst_38 {dimension_numbers = #tpu.dot_dimension_numbers<[1], [1], [0], [0], [0, 0, 1, 0], [], []>} : vector<8x64xf32>, vector<8x64xf32>, vector<8x8xf32> -> vector<8x8xf32>
    %62 = arith.addf %61, %60 : vector<8x8xf32>
    %cst_39 = arith.constant dense<0xFF800000> : vector<8xf32>
    %63 = vector.multi_reduction <maximumf>, %62, %cst_39 [1] : vector<8x8xf32> to vector<8xf32>
    %64 = vector.shape_cast %63 : vector<8xf32> to vector<8x1xf32>
    %65 = vector.broadcast %64 : vector<8x1xf32> to vector<8x8xf32>
    %66 = arith.subf %62, %65 : vector<8x8xf32>
    %67 = math.exp %66 : vector<8x8xf32>
    %cst_40 = arith.constant dense<0.000000e+00> : vector<8xf32>
    %68 = vector.multi_reduction <add>, %67, %cst_40 [1] : vector<8x8xf32> to vector<8xf32>
    %69 = vector.shape_cast %68 : vector<8xf32> to vector<8x1xf32>
    %70 = tpu.reciprocal %69 {approx = true} : vector<8x1xf32> -> vector<8x1xf32>
    %71 = vector.broadcast %70 : vector<8x1xf32> to vector<8x8xf32>
    %72 = arith.mulf %67, %71 : vector<8x8xf32>
    %c0_41 = arith.constant 0 : index
    %c0_42 = arith.constant 0 : index
    %c0_43 = arith.constant 0 : index
    %c0_44 = arith.constant 0 : index
    %73 = vector.load %arg20[%c0_41, %c0_42, %c0_43, %c0_44] : memref<1x2x8x8xf32, #tpu.memory_space<vmem>>, vector<1x1x8x8xf32>
    %74 = vector.shape_cast %73 : vector<1x1x8x8xf32> to vector<8x8xf32>
    %75 = vector.shape_cast %72 : vector<8x8xf32> to vector<1x1x8x8xf32>
    tpu.vector_store %arg20[%c0_41, %c0_42, %c0_43, %c0_44], %75 {strides = array<i32>} : memref<1x2x8x8xf32, #tpu.memory_space<vmem>>, vector<1x1x8x8xf32>,
    %cst_45 = arith.constant dense<0.000000e+00> : vector<8x64xf32>
    %76 = tpu.matmul %72, %25, %cst_45 {dimension_numbers = #tpu.dot_dimension_numbers<[1], [0], [0], [1], [0, 0, 1, 1], [], []>} : vector<8x8xf32>, vector<8x64xf32>, vector<8x64xf32> -> vector<8x64xf32>
    %c0_46 = arith.constant 0 : index
    %c0_47 = arith.constant 0 : index
    %77 = vector.load %arg21[%c0_46, %c0_47] : memref<8x128xf32, #tpu.memory_space<vmem>>, vector<8x64xf32>
    tpu.vector_store %arg21[%c0_46, %c0_47], %76 {strides = array<i32>} : memref<8x128xf32, #tpu.memory_space<vmem>>, vector<8x64xf32>,
    %78 = vector.extract_strided_slice %18 {offsets = [0, 64], sizes = [8, 64], strides = [1, 1]} : vector<8x128xf32> to vector<8x64xf32>
    %79 = vector.extract_strided_slice %11 {offsets = [0, 64], sizes = [8, 64], strides = [1, 1]} : vector<8x128xf32> to vector<8x64xf32>
    %80 = vector.extract_strided_slice %16 {offsets = [0, 64], sizes = [8, 64], strides = [1, 1]} : vector<8x128xf32> to vector<8x64xf32>
    %c0_48 = arith.constant 0 : index
    %c0_49 = arith.constant 0 : index
    %81 = vector.load %arg8[%c0_48, %c0_49] : memref<64x8xf32, #tpu.memory_space<vmem>>, vector<64x8xf32>
    %cst_50 = arith.constant dense<0.000000e+00> : vector<8x8xf32>
    %82 = tpu.matmul %78, %81, %cst_50 {dimension_numbers = #tpu.dot_dimension_numbers<[1], [0], [0], [1], [0, 0, 1, 1], [], []>} : vector<8x64xf32>, vector<64x8xf32>, vector<8x8xf32> -> vector<8x8xf32>
    %83 = vector.extract_strided_slice %82 {offsets = [0, 1], sizes = [8, 7], strides = [1, 1]} : vector<8x8xf32> to vector<8x7xf32>
    %c0_51 = arith.constant 0 : index
    %c0_52 = arith.constant 0 : index
    %84 = vector.load %arg22[%c0_51, %c0_52] : memref<8x8xf32, #tpu.memory_space<vmem>>, vector<8x7xf32>
    tpu.vector_store %arg22[%c0_51, %c0_52], %83 {strides = array<i32>} : memref<8x8xf32, #tpu.memory_space<vmem>>, vector<8x7xf32>,
    %85 = vector.extract_strided_slice %82 {offsets = [0, 0], sizes = [8, 1], strides = [1, 1]} : vector<8x8xf32> to vector<8x1xf32>
    %c0_53 = arith.constant 0 : index
    %c7_54 = arith.constant 7 : index
    %86 = vector.load %arg22[%c0_53, %c7_54] : memref<8x8xf32, #tpu.memory_space<vmem>>, vector<8x1xf32>
    tpu.vector_store %arg22[%c0_53, %c7_54], %85 {strides = array<i32>} : memref<8x8xf32, #tpu.memory_space<vmem>>, vector<8x1xf32>,
    %c1_i32_55 = arith.constant 1 : i32
    %87 = vector.broadcast %c1_i32_55 : i32 to vector<8x8xi32>
    %88 = arith.andi %22, %87 : vector<8x8xi32>
    %c0_i32_56 = arith.constant 0 : i32
    %89 = vector.broadcast %c0_i32_56 : i32 to vector<8x8xi32>
    %90 = arith.cmpi ne, %88, %89 : vector<8x8xi32>
    %c0_57 = arith.constant 0 : index
    %c0_58 = arith.constant 0 : index
    %91 = vector.load %arg22[%c0_57, %c0_58] : memref<8x8xf32, #tpu.memory_space<vmem>>, vector<8x8xf32>
    %92 = arith.select %90, %91, %82 : vector<8x8xi1>, vector<8x8xf32>
    %93 = vector.extract_strided_slice %92 {offsets = [0, 2], sizes = [8, 6], strides = [1, 1]} : vector<8x8xf32> to vector<8x6xf32>
    %c0_59 = arith.constant 0 : index
    %c0_60 = arith.constant 0 : index
    %94 = vector.load %arg22[%c0_59, %c0_60] : memref<8x8xf32, #tpu.memory_space<vmem>>, vector<8x6xf32>
    tpu.vector_store %arg22[%c0_59, %c0_60], %93 {strides = array<i32>} : memref<8x8xf32, #tpu.memory_space<vmem>>, vector<8x6xf32>,
    %95 = vector.extract_strided_slice %92 {offsets = [0, 0], sizes = [8, 2], strides = [1, 1]} : vector<8x8xf32> to vector<8x2xf32>
    %c0_61 = arith.constant 0 : index
    %c6_62 = arith.constant 6 : index
    %96 = vector.load %arg22[%c0_61, %c6_62] : memref<8x8xf32, #tpu.memory_space<vmem>>, vector<8x2xf32>
    tpu.vector_store %arg22[%c0_61, %c6_62], %95 {strides = array<i32>} : memref<8x8xf32, #tpu.memory_space<vmem>>, vector<8x2xf32>,
    %c2_i32_63 = arith.constant 2 : i32
    %97 = vector.broadcast %c2_i32_63 : i32 to vector<8x8xi32>
    %98 = arith.andi %22, %97 : vector<8x8xi32>
    %c0_i32_64 = arith.constant 0 : i32
    %99 = vector.broadcast %c0_i32_64 : i32 to vector<8x8xi32>
    %100 = arith.cmpi ne, %98, %99 : vector<8x8xi32>
    %c0_65 = arith.constant 0 : index
    %c0_66 = arith.constant 0 : index
    %101 = vector.load %arg22[%c0_65, %c0_66] : memref<8x8xf32, #tpu.memory_space<vmem>>, vector<8x8xf32>
    %102 = arith.select %100, %101, %92 : vector<8x8xi1>, vector<8x8xf32>
    %103 = vector.extract_strided_slice %102 {offsets = [0, 4], sizes = [8, 4], strides = [1, 1]} : vector<8x8xf32> to vector<8x4xf32>
    %c0_67 = arith.constant 0 : index
    %c0_68 = arith.constant 0 : index
    %104 = vector.load %arg22[%c0_67, %c0_68] : memref<8x8xf32, #tpu.memory_space<vmem>>, vector<8x4xf32>
    tpu.vector_store %arg22[%c0_67, %c0_68], %103 {strides = array<i32>} : memref<8x8xf32, #tpu.memory_space<vmem>>, vector<8x4xf32>,
    %105 = vector.extract_strided_slice %102 {offsets = [0, 0], sizes = [8, 4], strides = [1, 1]} : vector<8x8xf32> to vector<8x4xf32>
    %c0_69 = arith.constant 0 : index
    %c4_70 = arith.constant 4 : index
    %106 = vector.load %arg22[%c0_69, %c4_70] : memref<8x8xf32, #tpu.memory_space<vmem>>, vector<8x4xf32>
    tpu.vector_store %arg22[%c0_69, %c4_70], %105 {strides = array<i32>} : memref<8x8xf32, #tpu.memory_space<vmem>>, vector<8x4xf32>,
    %c4_i32_71 = arith.constant 4 : i32
    %107 = vector.broadcast %c4_i32_71 : i32 to vector<8x8xi32>
    %108 = arith.andi %22, %107 : vector<8x8xi32>
    %c0_i32_72 = arith.constant 0 : i32
    %109 = vector.broadcast %c0_i32_72 : i32 to vector<8x8xi32>
    %110 = arith.cmpi ne, %108, %109 : vector<8x8xi32>
    %c0_73 = arith.constant 0 : index
    %c0_74 = arith.constant 0 : index
    %111 = vector.load %arg22[%c0_73, %c0_74] : memref<8x8xf32, #tpu.memory_space<vmem>>, vector<8x8xf32>
    %112 = arith.select %110, %111, %102 : vector<8x8xi1>, vector<8x8xf32>
    %113 = arith.cmpi sle, %20, %19 : vector<8x8xi32>
    %cst_75 = arith.constant 0.000000e+00 : f32
    %114 = vector.broadcast %cst_75 : f32 to vector<8x8xf32>
    %115 = arith.select %113, %112, %114 : vector<8x8xi1>, vector<8x8xf32>
    %cst_76 = arith.constant dense<0.000000e+00> : vector<8x8xf32>
    %116 = tpu.matmul %78, %79, %cst_76 {dimension_numbers = #tpu.dot_dimension_numbers<[1], [1], [0], [0], [0, 0, 1, 0], [], []>} : vector<8x64xf32>, vector<8x64xf32>, vector<8x8xf32> -> vector<8x8xf32>
    %117 = arith.addf %116, %115 : vector<8x8xf32>
    %cst_77 = arith.constant dense<0xFF800000> : vector<8xf32>
    %118 = vector.multi_reduction <maximumf>, %117, %cst_77 [1] : vector<8x8xf32> to vector<8xf32>
    %119 = vector.shape_cast %118 : vector<8xf32> to vector<8x1xf32>
    %120 = vector.broadcast %119 : vector<8x1xf32> to vector<8x8xf32>
    %121 = arith.subf %117, %120 : vector<8x8xf32>
    %122 = math.exp %121 : vector<8x8xf32>
    %cst_78 = arith.constant dense<0.000000e+00> : vector<8xf32>
    %123 = vector.multi_reduction <add>, %122, %cst_78 [1] : vector<8x8xf32> to vector<8xf32>
    %124 = vector.shape_cast %123 : vector<8xf32> to vector<8x1xf32>
    %125 = tpu.reciprocal %124 {approx = true} : vector<8x1xf32> -> vector<8x1xf32>
    %126 = vector.broadcast %125 : vector<8x1xf32> to vector<8x8xf32>
    %127 = arith.mulf %122, %126 : vector<8x8xf32>
    %c0_79 = arith.constant 0 : index
    %c1 = arith.constant 1 : index
    %c0_80 = arith.constant 0 : index
    %c0_81 = arith.constant 0 : index
    %128 = vector.load %arg20[%c0_79, %c1, %c0_80, %c0_81] : memref<1x2x8x8xf32, #tpu.memory_space<vmem>>, vector<1x1x8x8xf32>
    %129 = vector.shape_cast %128 : vector<1x1x8x8xf32> to vector<8x8xf32>
    %130 = vector.shape_cast %127 : vector<8x8xf32> to vector<1x1x8x8xf32>
    tpu.vector_store %arg20[%c0_79, %c1, %c0_80, %c0_81], %130 {strides = array<i32>} : memref<1x2x8x8xf32, #tpu.memory_space<vmem>>, vector<1x1x8x8xf32>,
    %cst_82 = arith.constant dense<0.000000e+00> : vector<8x64xf32>
    %131 = tpu.matmul %127, %80, %cst_82 {dimension_numbers = #tpu.dot_dimension_numbers<[1], [0], [0], [1], [0, 0, 1, 1], [], []>} : vector<8x8xf32>, vector<8x64xf32>, vector<8x64xf32> -> vector<8x64xf32>
    %c0_83 = arith.constant 0 : index
    %c64 = arith.constant 64 : index
    %132 = vector.load %arg21[%c0_83, %c64] : memref<8x128xf32, #tpu.memory_space<vmem>>, vector<8x64xf32>
    tpu.vector_store %arg21[%c0_83, %c64], %131 {strides = array<i32>} : memref<8x128xf32, #tpu.memory_space<vmem>>, vector<8x64xf32>,
    %c0_84 = arith.constant 0 : index
    %c0_85 = arith.constant 0 : index
    %133 = vector.load %arg21[%c0_84, %c0_85] : memref<8x128xf32, #tpu.memory_space<vmem>>, vector<8x128xf32>
    %c0_86 = arith.constant 0 : index
    %c0_87 = arith.constant 0 : index
    %134 = vector.load %arg9[%c0_86, %c0_87] : memref<128x128xf32, #tpu.memory_space<vmem>>, vector<128x128xf32>
    %cst_88 = arith.constant dense<0.000000e+00> : vector<8x128xf32>
    %135 = tpu.matmul %133, %134, %cst_88 {dimension_numbers = #tpu.dot_dimension_numbers<[1], [0], [0], [1], [0, 0, 1, 1], [], []>} : vector<8x128xf32>, vector<128x128xf32>, vector<8x128xf32> -> vector<8x128xf32>
    %c0_89 = arith.constant 0 : index
    %c0_90 = arith.constant 0 : index
    %136 = vector.load %arg10[%c0_89, %c0_90] : memref<1x128xf32, #tpu.memory_space<vmem>>, vector<1x128xf32>
    %137 = vector.broadcast %136 : vector<1x128xf32> to vector<8x128xf32>
    %138 = arith.addf %135, %137 : vector<8x128xf32>
    %139 = arith.addf %138, %1 : vector<8x128xf32>
    %c0_91 = arith.constant 0 : index
    %c0_92 = arith.constant 0 : index
    %140 = vector.load %arg15[%c0_91, %c0_92] : memref<1x128xf32, #tpu.memory_space<vmem>>, vector<1x128xf32>
    %c0_93 = arith.constant 0 : index
    %c0_94 = arith.constant 0 : index
    %141 = vector.load %arg16[%c0_93, %c0_94] : memref<1x128xf32, #tpu.memory_space<vmem>>, vector<1x128xf32>
    %cst_95 = arith.constant dense<0.000000e+00> : vector<8xf32>
    %142 = vector.multi_reduction <add>, %139, %cst_95 [1] : vector<8x128xf32> to vector<8xf32>
    %143 = vector.shape_cast %142 : vector<8xf32> to vector<8x1xf32>
    %cst_96 = arith.constant 1.280000e+02 : f32
    %144 = vector.broadcast %cst_96 : f32 to vector<8x1xf32>
    %145 = arith.divf %143, %144 : vector<8x1xf32>
    %146 = vector.broadcast %145 : vector<8x1xf32> to vector<8x128xf32>
    %147 = arith.subf %139, %146 : vector<8x128xf32>
    %148 = arith.mulf %147, %147 : vector<8x128xf32>
    %cst_97 = arith.constant dense<0.000000e+00> : vector<8xf32>
    %149 = vector.multi_reduction <add>, %148, %cst_97 [1] : vector<8x128xf32> to vector<8xf32>
    %150 = vector.shape_cast %149 : vector<8xf32> to vector<8x1xf32>
    %cst_98 = arith.constant 1.280000e+02 : f32
    %151 = vector.broadcast %cst_98 : f32 to vector<8x1xf32>
    %152 = arith.divf %150, %151 : vector<8x1xf32>
    %153 = vector.broadcast %145 : vector<8x1xf32> to vector<8x128xf32>
    %154 = arith.subf %139, %153 : vector<8x128xf32>
    %cst_99 = arith.constant 9.99999997E-7 : f32
    %155 = vector.broadcast %cst_99 : f32 to vector<8x1xf32>
    %156 = arith.addf %152, %155 : vector<8x1xf32>
    %157 = math.rsqrt %156 : vector<8x1xf32>
    %158 = vector.broadcast %157 : vector<8x1xf32> to vector<8x128xf32>
    %159 = arith.mulf %154, %158 : vector<8x128xf32>
    %160 = vector.broadcast %140 : vector<1x128xf32> to vector<8x128xf32>
    %161 = arith.mulf %159, %160 : vector<8x128xf32>
    %162 = vector.broadcast %141 : vector<1x128xf32> to vector<8x128xf32>
    %163 = arith.addf %161, %162 : vector<8x128xf32>
    %c0_100 = arith.constant 0 : index
    %c0_101 = arith.constant 0 : index
    %164 = vector.load %arg11[%c0_100, %c0_101] : memref<128x64xf32, #tpu.memory_space<vmem>>, vector<128x64xf32>
    %cst_102 = arith.constant dense<0.000000e+00> : vector<8x64xf32>
    %165 = tpu.matmul %163, %164, %cst_102 {dimension_numbers = #tpu.dot_dimension_numbers<[1], [0], [0], [1], [0, 0, 1, 1], [], []>} : vector<8x128xf32>, vector<128x64xf32>, vector<8x64xf32> -> vector<8x64xf32>
    %c0_103 = arith.constant 0 : index
    %c0_104 = arith.constant 0 : index
    %166 = vector.load %arg12[%c0_103, %c0_104] : memref<1x64xf32, #tpu.memory_space<vmem>>, vector<1x64xf32>
    %167 = vector.broadcast %166 : vector<1x64xf32> to vector<8x64xf32>
    %168 = arith.addf %165, %167 : vector<8x64xf32>
    %cst_105 = arith.constant 0.000000e+00 : f32
    %169 = vector.broadcast %cst_105 : f32 to vector<8x64xf32>
    %170 = arith.maximumf %168, %169 : vector<8x64xf32>
    %c0_106 = arith.constant 0 : index
    %c0_107 = arith.constant 0 : index
    %171 = vector.load %arg13[%c0_106, %c0_107] : memref<64x128xf32, #tpu.memory_space<vmem>>, vector<64x128xf32>
    %cst_108 = arith.constant dense<0.000000e+00> : vector<8x128xf32>
    %172 = tpu.matmul %170, %171, %cst_108 {dimension_numbers = #tpu.dot_dimension_numbers<[1], [0], [0], [1], [0, 0, 1, 1], [], []>} : vector<8x64xf32>, vector<64x128xf32>, vector<8x128xf32> -> vector<8x128xf32>
    %c0_109 = arith.constant 0 : index
    %c0_110 = arith.constant 0 : index
    %173 = vector.load %arg14[%c0_109, %c0_110] : memref<1x128xf32, #tpu.memory_space<vmem>>, vector<1x128xf32>
    %174 = vector.broadcast %173 : vector<1x128xf32> to vector<8x128xf32>
    %175 = arith.addf %172, %174 : vector<8x128xf32>
    %176 = arith.addf %163, %175 : vector<8x128xf32>
    %c0_111 = arith.constant 0 : index
    %c0_112 = arith.constant 0 : index
    %177 = vector.load %arg17[%c0_111, %c0_112] : memref<1x128xf32, #tpu.memory_space<vmem>>, vector<1x128xf32>
    %c0_113 = arith.constant 0 : index
    %c0_114 = arith.constant 0 : index
    %178 = vector.load %arg18[%c0_113, %c0_114] : memref<1x128xf32, #tpu.memory_space<vmem>>, vector<1x128xf32>
    %cst_115 = arith.constant dense<0.000000e+00> : vector<8xf32>
    %179 = vector.multi_reduction <add>, %176, %cst_115 [1] : vector<8x128xf32> to vector<8xf32>
    %180 = vector.shape_cast %179 : vector<8xf32> to vector<8x1xf32>
    %cst_116 = arith.constant 1.280000e+02 : f32
    %181 = vector.broadcast %cst_116 : f32 to vector<8x1xf32>
    %182 = arith.divf %180, %181 : vector<8x1xf32>
    %183 = vector.broadcast %182 : vector<8x1xf32> to vector<8x128xf32>
    %184 = arith.subf %176, %183 : vector<8x128xf32>
    %185 = arith.mulf %184, %184 : vector<8x128xf32>
    %cst_117 = arith.constant dense<0.000000e+00> : vector<8xf32>
    %186 = vector.multi_reduction <add>, %185, %cst_117 [1] : vector<8x128xf32> to vector<8xf32>
    %187 = vector.shape_cast %186 : vector<8xf32> to vector<8x1xf32>
    %cst_118 = arith.constant 1.280000e+02 : f32
    %188 = vector.broadcast %cst_118 : f32 to vector<8x1xf32>
    %189 = arith.divf %187, %188 : vector<8x1xf32>
    %190 = vector.broadcast %182 : vector<8x1xf32> to vector<8x128xf32>
    %191 = arith.subf %176, %190 : vector<8x128xf32>
    %cst_119 = arith.constant 9.99999997E-7 : f32
    %192 = vector.broadcast %cst_119 : f32 to vector<8x1xf32>
    %193 = arith.addf %189, %192 : vector<8x1xf32>
    %194 = math.rsqrt %193 : vector<8x1xf32>
    %195 = vector.broadcast %194 : vector<8x1xf32> to vector<8x128xf32>
    %196 = arith.mulf %191, %195 : vector<8x128xf32>
    %197 = vector.broadcast %177 : vector<1x128xf32> to vector<8x128xf32>
    %198 = arith.mulf %196, %197 : vector<8x128xf32>
    %199 = vector.broadcast %178 : vector<1x128xf32> to vector<8x128xf32>
    %200 = arith.addf %198, %199 : vector<8x128xf32>
    %c0_120 = arith.constant 0 : index
    %c0_121 = arith.constant 0 : index
    %c0_122 = arith.constant 0 : index
    %201 = vector.load %arg19[%c0_120, %c0_121, %c0_122] : memref<1x8x128xf32, #tpu.memory_space<vmem>>, vector<1x8x128xf32>
    %202 = vector.shape_cast %201 : vector<1x8x128xf32> to vector<8x128xf32>
    %203 = vector.shape_cast %200 : vector<8x128xf32> to vector<1x8x128xf32>
    tpu.vector_store %arg19[%c0_120, %c0_121, %c0_122], %203 {strides = array<i32>} : memref<1x8x128xf32, #tpu.memory_space<vmem>>, vector<1x8x128xf32>,
    return
  }
  func.func @transform_0(%arg0: i32) -> (i32, i32, i32) {
    %c0_i32 = arith.constant 0 : i32
    %c0_i32_0 = arith.constant 0 : i32
    %c0_i32_1 = arith.constant 0 : i32
    return %arg0, %c0_i32, %c0_i32_0 : i32, i32, i32
  }
  func.func @transform_1(%arg0: i32) -> (i32, i32) {
    %c0_i32 = arith.constant 0 : i32
    %c0_i32_0 = arith.constant 0 : i32
    %c0_i32_1 = arith.constant 0 : i32
    return %c0_i32, %c0_i32_0 : i32, i32
  }
  func.func @transform_2(%arg0: i32) -> (i32, i32) {
    %c0_i32 = arith.constant 0 : i32
    %c0_i32_0 = arith.constant 0 : i32
    %c0_i32_1 = arith.constant 0 : i32
    return %c0_i32, %c0_i32_0 : i32, i32
  }
  func.func @transform_3(%arg0: i32) -> (i32, i32) {
    %c0_i32 = arith.constant 0 : i32
    %c0_i32_0 = arith.constant 0 : i32
    %c0_i32_1 = arith.constant 0 : i32
    return %c0_i32, %c0_i32_0 : i32, i32
  }
  func.func @transform_4(%arg0: i32) -> (i32, i32) {
    %c0_i32 = arith.constant 0 : i32
    %c0_i32_0 = arith.constant 0 : i32
    %c0_i32_1 = arith.constant 0 : i32
    return %c0_i32, %c0_i32_0 : i32, i32
  }
  func.func @transform_5(%arg0: i32) -> (i32, i32) {
    %c0_i32 = arith.constant 0 : i32
    %c0_i32_0 = arith.constant 0 : i32
    %c0_i32_1 = arith.constant 0 : i32
    return %c0_i32, %c0_i32_0 : i32, i32
  }
  func.func @transform_6(%arg0: i32) -> (i32, i32) {
    %c0_i32 = arith.constant 0 : i32
    %c0_i32_0 = arith.constant 0 : i32
    %c0_i32_1 = arith.constant 0 : i32
    return %c0_i32, %c0_i32_0 : i32, i32
  }
  func.func @transform_7(%arg0: i32) -> (i32, i32) {
    %c0_i32 = arith.constant 0 : i32
    %c0_i32_0 = arith.constant 0 : i32
    %c0_i32_1 = arith.constant 0 : i32
    return %c0_i32, %c0_i32_0 : i32, i32
  }
  func.func @transform_8(%arg0: i32) -> (i32, i32) {
    %c0_i32 = arith.constant 0 : i32
    %c0_i32_0 = arith.constant 0 : i32
    %c0_i32_1 = arith.constant 0 : i32
    return %c0_i32, %c0_i32_0 : i32, i32
  }
  func.func @transform_9(%arg0: i32) -> (i32, i32) {
    %c0_i32 = arith.constant 0 : i32
    %c0_i32_0 = arith.constant 0 : i32
    %c0_i32_1 = arith.constant 0 : i32
    return %c0_i32, %c0_i32_0 : i32, i32
  }
  func.func @transform_10(%arg0: i32) -> (i32, i32) {
    %c0_i32 = arith.constant 0 : i32
    %c0_i32_0 = arith.constant 0 : i32
    %c0_i32_1 = arith.constant 0 : i32
    return %c0_i32, %c0_i32_0 : i32, i32
  }
  func.func @transform_11(%arg0: i32) -> (i32, i32) {
    %c0_i32 = arith.constant 0 : i32
    %c0_i32_0 = arith.constant 0 : i32
    %c0_i32_1 = arith.constant 0 : i32
    return %c0_i32, %c0_i32_0 : i32, i32
  }
  func.func @transform_12(%arg0: i32) -> (i32, i32) {
    %c0_i32 = arith.constant 0 : i32
    %c0_i32_0 = arith.constant 0 : i32
    %c0_i32_1 = arith.constant 0 : i32
    return %c0_i32, %c0_i32_0 : i32, i32
  }
  func.func @transform_13(%arg0: i32) -> (i32, i32) {
    %c0_i32 = arith.constant 0 : i32
    %c0_i32_0 = arith.constant 0 : i32
    %c0_i32_1 = arith.constant 0 : i32
    return %c0_i32, %c0_i32_0 : i32, i32
  }
  func.func @transform_14(%arg0: i32) -> (i32, i32) {
    %c0_i32 = arith.constant 0 : i32
    %c0_i32_0 = arith.constant 0 : i32
    %c0_i32_1 = arith.constant 0 : i32
    return %c0_i32, %c0_i32_0 : i32, i32
  }
  func.func @transform_15(%arg0: i32) -> (i32, i32) {
    %c0_i32 = arith.constant 0 : i32
    %c0_i32_0 = arith.constant 0 : i32
    %c0_i32_1 = arith.constant 0 : i32
    return %c0_i32, %c0_i32_0 : i32, i32
  }
  func.func @transform_16(%arg0: i32) -> (i32, i32) {
    %c0_i32 = arith.constant 0 : i32
    %c0_i32_0 = arith.constant 0 : i32
    %c0_i32_1 = arith.constant 0 : i32
    return %c0_i32, %c0_i32_0 : i32, i32
  }
  func.func @transform_17(%arg0: i32) -> (i32, i32) {
    %c0_i32 = arith.constant 0 : i32
    %c0_i32_0 = arith.constant 0 : i32
    %c0_i32_1 = arith.constant 0 : i32
    return %c0_i32, %c0_i32_0 : i32, i32
  }
  func.func @transform_18(%arg0: i32) -> (i32, i32, i32) {
    %c0_i32 = arith.constant 0 : i32
    %c0_i32_0 = arith.constant 0 : i32
    %c0_i32_1 = arith.constant 0 : i32
    return %arg0, %c0_i32, %c0_i32_0 : i32, i32, i32
  }
  func.func @transform_19(%arg0: i32) -> (i32, i32, i32, i32) {
    %c0_i32 = arith.constant 0 : i32
    %c0_i32_0 = arith.constant 0 : i32
    %c0_i32_1 = arith.constant 0 : i32
    %c0_i32_2 = arith.constant 0 : i32
    return %arg0, %c0_i32, %c0_i32_0, %c0_i32_1 : i32, i32, i32, i32
  }
}

</mosaic_0001>

<llo_original>
// kernel: tpu_custom_call.1
$region0: #{tpu_custom_call.1}
  #allocation0 [shape = 'u32[]', space=smem, size = 0x4, offset = 0x4, fixed_abs, tag = 'smem constant byte address 0x4 - core index']
  #allocation1 [shape = 'u32[144,128]{1,0:T(1,128)}', space=vmem, size = 0x12000, scoped, tag = 'internal scratch']
  #allocation2 [shape = 'f32[8,128]{1,0:T(8,128)}', space=vmem, size = 0x1000, scoped, tag = 'scratch operand']
  #allocation3 [shape = 'f32[8,8]{1,0:T(8,128)}', space=vmem, size = 0x1000, scoped, tag = 'scratch operand']
  %s0 = inlined_call_operand.hbm [shape: f32[2,8,128], index: 0, kind: input, shape index: {}]
  %s1 = inlined_call_operand.vmem [shape: f32[128,128], index: 1, kind: input, shape index: {}]
  %s2 = inlined_call_operand.vmem [shape: f32[1,128], index: 2, kind: input, shape index: {}]
  %s3 = inlined_call_operand.vmem [shape: f32[128,128], index: 3, kind: input, shape index: {}]
  %s4 = inlined_call_operand.vmem [shape: f32[1,128], index: 4, kind: input, shape index: {}]
  %s5 = inlined_call_operand.hbm [shape: f32[128,128], index: 5, kind: input, shape index: {}]
  %s6 = inlined_call_operand.vmem [shape: f32[1,128], index: 6, kind: input, shape index: {}]
  %s7 = inlined_call_operand.vmem [shape: f32[64,8], index: 7, kind: input, shape index: {}]
  %s8 = inlined_call_operand.hbm [shape: f32[128,128], index: 8, kind: input, shape index: {}]
  %s9 = inlined_call_operand.vmem [shape: f32[1,128], index: 9, kind: input, shape index: {}]
  %s10 = inlined_call_operand.vmem [shape: f32[128,64], index: 10, kind: input, shape index: {}]
  %s11 = inlined_call_operand.vmem [shape: f32[1,64], index: 11, kind: input, shape index: {}]
  %s12 = inlined_call_operand.hbm [shape: f32[64,128], index: 12, kind: input, shape index: {}]
  %s13 = inlined_call_operand.vmem [shape: f32[1,128], index: 13, kind: input, shape index: {}]
  %s14 = inlined_call_operand.vmem [shape: f32[1,128], index: 14, kind: input, shape index: {}]
  %s15 = inlined_call_operand.vmem [shape: f32[1,128], index: 15, kind: input, shape index: {}]
  %s16 = inlined_call_operand.vmem [shape: f32[1,128], index: 16, kind: input, shape index: {}]
  %s17 = inlined_call_operand.vmem [shape: f32[1,128], index: 17, kind: input, shape index: {}]
  %s18 = inlined_call_operand.hbm [shape: f32[2,8,128], index: 18, kind: output, shape index: {0}]
  %s19 = inlined_call_operand.hbm [shape: f32[2,2,8,8], index: 19, kind: output, shape index: {1}]
  %20 = xla_tuple %s18, %s19
  %s21 = sld [smem:[#allocation0]]
  $region129: #{tpu_custom_call.1} parent=0
    _
  %s23 = ssub.s32 1, %s21
  %s24 = scalar_select 0, %s23, %s21
  $region1: #{tpu_custom_call.1} parent=0
    #allocation4 [shape = 'u8[8192]{0}', space=vmem, size = 0x2000, scoped, tag = 'input window, operand 0']
    #allocation5 [shape = 's32[2]{0}', space=sflag, size = 0x8, scoped, tag = 'scoped memory for tpu_custom_call.1']
    #allocation6 [shape = 's32[2]{0}', space=sflag, size = 0x8, scoped, tag = 'scoped memory for tpu_custom_call.1']
    #allocation7 [shape = 'u8[65536]{0}', space=vmem, size = 0x10000, scoped, tag = 'input window, operand 5, single buffered']
    #allocation8 [shape = 's32[1]{0}', space=sflag, size = 0x4, scoped, tag = 'scoped memory for tpu_custom_call.1']
    #allocation9 [shape = 'u8[65536]{0}', space=vmem, size = 0x10000, scoped, tag = 'input window, operand 8, single buffered']
    #allocation10 [shape = 'u8[32768]{0}', space=vmem, size = 0x8000, scoped, tag = 'input window, operand 12, single buffered']
    #allocation11 [shape = 's32[1]{0}', space=sflag, size = 0x4, scoped, tag = 'scoped memory for tpu_custom_call.1']
    #allocation12 [shape = 'u8[8192]{0}', space=vmem, size = 0x2000, scoped, tag = 'output window, operand 0']
    #allocation13 [shape = 'u8[16384]{0}', space=vmem, size = 0x4000, scoped, tag = 'output window, operand 1']
    #allocation14 [shape = 's32[2]{0}', space=sflag, size = 0x8, scoped, tag = 'scoped memory for tpu_custom_call.1']
    %25 = vsyncpa [#allocation5], 0
    %s26 = scalar_lea.sflag [#allocation5], 1
    %27 = vsyncpa %s26, 0
    %28 = vsyncpa [#allocation8], 0
    %29 = vsyncpa [#allocation11], 0
    %30 = vsyncpa [#allocation6], 0
    %s31 = scalar_lea.sflag [#allocation6], 1
    %32 = vsyncpa %s31, 0
    %33 = vsyncpa [#allocation14], 0
    %s34 = scalar_lea.sflag [#allocation14], 1
    %35 = vsyncpa %s34, 0
    loop: start=0, step=1, limit=4
    $region2: #{tpu_custom_call.1} parent=1 // loop_pre_header
      _
    $region3: #{tpu_custom_call.1} parent=1 // loop_header
      %s37 = sphi 0, %s41
      %p38 = scmp.ge.s32.totalorder %s37, 4
      %s47 = sphi 0, %s49
      %s50 = sphi 0, %s47
      %s51 = sphi 0, %s50
      %s67 = sphi 0, %s51
      %s71 = sphi 0, %s71
      %s73 = sphi 0, %s71
      %s74 = sphi 0, %s73
      %s88 = sphi 0, %s74
      %s92 = sphi 0, %s92
      %s94 = sphi 0, %s92
      %s95 = sphi 0, %s94
      %s109 = sphi 0, %s95
      %s113 = sphi 0, %s113
      %s115 = sphi 0, %s113
      %s116 = sphi 0, %s115
      %s130 = sphi 0, %s116
      %s134 = sphi 0, %s134
      %s136 = sphi 0, %s134
      %s137 = sphi 0, %s136
      %s151 = sphi 0, %s137
      %s155 = sphi 0, %s155
      %s157 = sphi 0, %s155
      %s158 = sphi 0, %s157
      %s172 = sphi 0, %s158
      %s176 = sphi 0, %s176
      %s178 = sphi 0, %s176
      %s179 = sphi 0, %s178
      %s193 = sphi 0, %s179
      %s197 = sphi 0, %s197
      %s199 = sphi 0, %s197
      %s200 = sphi 0, %s199
      %s214 = sphi 0, %s200
      %s218 = sphi 0, %s218
      %s220 = sphi 0, %s218
      %s221 = sphi 0, %s220
      %s235 = sphi 0, %s221
      %s239 = sphi 0, %s239
      %s241 = sphi 0, %s239
      %s242 = sphi 0, %s241
      %s256 = sphi 0, %s242
      %s260 = sphi 0, %s260
      %s262 = sphi 0, %s260
      %s263 = sphi 0, %s262
      %s277 = sphi 0, %s263
      %s281 = sphi 0, %s281
      %s283 = sphi 0, %s281
      %s284 = sphi 0, %s283
      %s298 = sphi 0, %s284
      %s302 = sphi 0, %s302
      %s304 = sphi 0, %s302
      %s305 = sphi 0, %s304
      %s319 = sphi 0, %s305
      %s323 = sphi 0, %s323
      %s325 = sphi 0, %s323
      %s326 = sphi 0, %s325
      %s340 = sphi 0, %s326
      %s344 = sphi 0, %s344
      %s346 = sphi 0, %s344
      %s347 = sphi 0, %s346
      %s361 = sphi 0, %s347
      %s365 = sphi 0, %s365
      %s367 = sphi 0, %s365
      %s368 = sphi 0, %s367
      %s382 = sphi 0, %s368
      %s386 = sphi 0, %s386
      %s388 = sphi 0, %s386
      %s389 = sphi 0, %s388
      %s403 = sphi 0, %s389
      %s407 = sphi 0, %s407
      %s409 = sphi 0, %s407
      %s410 = sphi 0, %s409
      %s424 = sphi 0, %s410
      %s430 = sphi 0, %s432
      %s433 = sphi 0, %s430
      %s434 = sphi 0, %s433
      %s450 = sphi 0, %s434
      %s456 = sphi 0, %s458
      %s459 = sphi 0, %s456
      %s460 = sphi 0, %s459
      %s476 = sphi 0, %s460
    $region4: #{tpu_custom_call.1} parent=1 // loop_header_branch
      %40 = sbr.rel (%p38) target = $region8
    $region5: #{tpu_custom_call.1} parent=1 // loop_body
      %s42 = ssub.s32 %s37, 1
      %s43 = ssub.s32 %s37, 2
      %s44 = sadd.s32 %s37, 1
      %s45 = ssub.s32 %s37, %s44
      %p46 = scmp.eq.s32.totalorder %s45, 0
      %s48 = sadd.s32 %s47, 1
      %s49 = scalar_select %p46, %s47, %s48
      %p52 = pneg %p46
      %p53 = scmp.eq.s32.totalorder %s37, 1
      %p54 = por %p52, %p53
      %p55 = scmp.ne.s32.totalorder %s47, %s50
      %p56 = scmp.eq.s32.totalorder %s37, 0
      %p57 = por %p55, %p56
      %p58 = scmp.ne.s32.totalorder %s47, %s50
      %p59 = scmp.eq.s32.totalorder %s42, 1
      %p60 = por %p58, %p59
      %p61 = scmp.ne.s32.totalorder %s50, %s51
      %p62 = scmp.eq.s32.totalorder %s42, 0
      %p63 = por %p61, %p62
      %p64 = scmp.ne.s32.totalorder %s50, %s51
      %p65 = scmp.eq.s32.totalorder %s43, 1
      %p66 = por %p64, %p65
      %p68 = scmp.ne.s32.totalorder %s51, %s67
      %p69 = scmp.eq.s32.totalorder %s43, 0
      %p70 = por %p68, %p69
      %s72 = sadd.s32 %s71, 1
      %p75 = scmp.eq.s32.totalorder %s37, 1
      %p76 = scmp.ne.s32.totalorder %s71, %s73
      %p77 = scmp.eq.s32.totalorder %s37, 0
      %p78 = por %p76, %p77
      %p79 = scmp.ne.s32.totalorder %s71, %s73
      %p80 = scmp.eq.s32.totalorder %s42, 1
      %p81 = por %p79, %p80
      %p82 = scmp.ne.s32.totalorder %s73, %s74
      %p83 = scmp.eq.s32.totalorder %s42, 0
      %p84 = por %p82, %p83
      %p85 = scmp.ne.s32.totalorder %s73, %s74
      %p86 = scmp.eq.s32.totalorder %s43, 1
      %p87 = por %p85, %p86
      %p89 = scmp.ne.s32.totalorder %s74, %s88
      %p90 = scmp.eq.s32.totalorder %s43, 0
      %p91 = por %p89, %p90
      %s93 = sadd.s32 %s92, 1
      %p96 = scmp.eq.s32.totalorder %s37, 1
      %p97 = scmp.ne.s32.totalorder %s92, %s94
      %p98 = scmp.eq.s32.totalorder %s37, 0
      %p99 = por %p97, %p98
      %p100 = scmp.ne.s32.totalorder %s92, %s94
      %p101 = scmp.eq.s32.totalorder %s42, 1
      %p102 = por %p100, %p101
      %p103 = scmp.ne.s32.totalorder %s94, %s95
      %p104 = scmp.eq.s32.totalorder %s42, 0
      %p105 = por %p103, %p104
      %p106 = scmp.ne.s32.totalorder %s94, %s95
      %p107 = scmp.eq.s32.totalorder %s43, 1
      %p108 = por %p106, %p107
      %p110 = scmp.ne.s32.totalorder %s95, %s109
      %p111 = scmp.eq.s32.totalorder %s43, 0
      %p112 = por %p110, %p111
      %s114 = sadd.s32 %s113, 1
      %p117 = scmp.eq.s32.totalorder %s37, 1
      %p118 = scmp.ne.s32.totalorder %s113, %s115
      %p119 = scmp.eq.s32.totalorder %s37, 0
      %p120 = por %p118, %p119
      %p121 = scmp.ne.s32.totalorder %s113, %s115
      %p122 = scmp.eq.s32.totalorder %s42, 1
      %p123 = por %p121, %p122
      %p124 = scmp.ne.s32.totalorder %s115, %s116
      %p125 = scmp.eq.s32.totalorder %s42, 0
      %p126 = por %p124, %p125
      %p127 = scmp.ne.s32.totalorder %s115, %s116
      %p128 = scmp.eq.s32.totalorder %s43, 1
      %p129 = por %p127, %p128
      %p131 = scmp.ne.s32.totalorder %s116, %s130
      %p132 = scmp.eq.s32.totalorder %s43, 0
      %p133 = por %p131, %p132
      %s135 = sadd.s32 %s134, 1
      %p138 = scmp.eq.s32.totalorder %s37, 1
      %p139 = scmp.ne.s32.totalorder %s134, %s136
      %p140 = scmp.eq.s32.totalorder %s37, 0
      %p141 = por %p139, %p140
      %p142 = scmp.ne.s32.totalorder %s134, %s136
      %p143 = scmp.eq.s32.totalorder %s42, 1
      %p144 = por %p142, %p143
      %p145 = scmp.ne.s32.totalorder %s136, %s137
      %p146 = scmp.eq.s32.totalorder %s42, 0
      %p147 = por %p145, %p146
      %p148 = scmp.ne.s32.totalorder %s136, %s137
      %p149 = scmp.eq.s32.totalorder %s43, 1
      %p150 = por %p148, %p149
      %p152 = scmp.ne.s32.totalorder %s137, %s151
      %p153 = scmp.eq.s32.totalorder %s43, 0
      %p154 = por %p152, %p153
      %s156 = sadd.s32 %s155, 1
      %p159 = scmp.eq.s32.totalorder %s37, 1
      %p160 = scmp.ne.s32.totalorder %s155, %s157
      %p161 = scmp.eq.s32.totalorder %s37, 0
      %p162 = por %p160, %p161
      %p163 = scmp.ne.s32.totalorder %s155, %s157
      %p164 = scmp.eq.s32.totalorder %s42, 1
      %p165 = por %p163, %p164
      %p166 = scmp.ne.s32.totalorder %s157, %s158
      %p167 = scmp.eq.s32.totalorder %s42, 0
      %p168 = por %p166, %p167
      %p169 = scmp.ne.s32.totalorder %s157, %s158
      %p170 = scmp.eq.s32.totalorder %s43, 1
      %p171 = por %p169, %p170
      %p173 = scmp.ne.s32.totalorder %s158, %s172
      %p174 = scmp.eq.s32.totalorder %s43, 0
      %p175 = por %p173, %p174
      %s177 = sadd.s32 %s176, 1
      %p180 = scmp.eq.s32.totalorder %s37, 1
      %p181 = scmp.ne.s32.totalorder %s176, %s178
      %p182 = scmp.eq.s32.totalorder %s37, 0
      %p183 = por %p181, %p182
      %p184 = scmp.ne.s32.totalorder %s176, %s178
      %p185 = scmp.eq.s32.totalorder %s42, 1
      %p186 = por %p184, %p185
      %p187 = scmp.ne.s32.totalorder %s178, %s179
      %p188 = scmp.eq.s32.totalorder %s42, 0
      %p189 = por %p187, %p188
      %p190 = scmp.ne.s32.totalorder %s178, %s179
      %p191 = scmp.eq.s32.totalorder %s43, 1
      %p192 = por %p190, %p191
      %p194 = scmp.ne.s32.totalorder %s179, %s193
      %p195 = scmp.eq.s32.totalorder %s43, 0
      %p196 = por %p194, %p195
      %s198 = sadd.s32 %s197, 1
      %p201 = scmp.eq.s32.totalorder %s37, 1
      %p202 = scmp.ne.s32.totalorder %s197, %s199
      %p203 = scmp.eq.s32.totalorder %s37, 0
      %p204 = por %p202, %p203
      %p205 = scmp.ne.s32.totalorder %s197, %s199
      %p206 = scmp.eq.s32.totalorder %s42, 1
      %p207 = por %p205, %p206
      %p208 = scmp.ne.s32.totalorder %s199, %s200
      %p209 = scmp.eq.s32.totalorder %s42, 0
      %p210 = por %p208, %p209
      %p211 = scmp.ne.s32.totalorder %s199, %s200
      %p212 = scmp.eq.s32.totalorder %s43, 1
      %p213 = por %p211, %p212
      %p215 = scmp.ne.s32.totalorder %s200, %s214
      %p216 = scmp.eq.s32.totalorder %s43, 0
      %p217 = por %p215, %p216
      %s219 = sadd.s32 %s218, 1
      %p222 = scmp.eq.s32.totalorder %s37, 1
      %p223 = scmp.ne.s32.totalorder %s218, %s220
      %p224 = scmp.eq.s32.totalorder %s37, 0
      %p225 = por %p223, %p224
      %p226 = scmp.ne.s32.totalorder %s218, %s220
      %p227 = scmp.eq.s32.totalorder %s42, 1
      %p228 = por %p226, %p227
      %p229 = scmp.ne.s32.totalorder %s220, %s221
      %p230 = scmp.eq.s32.totalorder %s42, 0
      %p231 = por %p229, %p230
      %p232 = scmp.ne.s32.totalorder %s220, %s221
      %p233 = scmp.eq.s32.totalorder %s43, 1
      %p234 = por %p232, %p233
      %p236 = scmp.ne.s32.totalorder %s221, %s235
      %p237 = scmp.eq.s32.totalorder %s43, 0
      %p238 = por %p236, %p237
      %s240 = sadd.s32 %s239, 1
      %p243 = scmp.eq.s32.totalorder %s37, 1
      %p244 = scmp.ne.s32.totalorder %s239, %s241
      %p245 = scmp.eq.s32.totalorder %s37, 0
      %p246 = por %p244, %p245
      %p247 = scmp.ne.s32.totalorder %s239, %s241
      %p248 = scmp.eq.s32.totalorder %s42, 1
      %p249 = por %p247, %p248
      %p250 = scmp.ne.s32.totalorder %s241, %s242
      %p251 = scmp.eq.s32.totalorder %s42, 0
      %p252 = por %p250, %p251
      %p253 = scmp.ne.s32.totalorder %s241, %s242
      %p254 = scmp.eq.s32.totalorder %s43, 1
      %p255 = por %p253, %p254
      %p257 = scmp.ne.s32.totalorder %s242, %s256
      %p258 = scmp.eq.s32.totalorder %s43, 0
      %p259 = por %p257, %p258
      %s261 = sadd.s32 %s260, 1
      %p264 = scmp.eq.s32.totalorder %s37, 1
      %p265 = scmp.ne.s32.totalorder %s260, %s262
      %p266 = scmp.eq.s32.totalorder %s37, 0
      %p267 = por %p265, %p266
      %p268 = scmp.ne.s32.totalorder %s260, %s262
      %p269 = scmp.eq.s32.totalorder %s42, 1
      %p270 = por %p268, %p269
      %p271 = scmp.ne.s32.totalorder %s262, %s263
      %p272 = scmp.eq.s32.totalorder %s42, 0
      %p273 = por %p271, %p272
      %p274 = scmp.ne.s32.totalorder %s262, %s263
      %p275 = scmp.eq.s32.totalorder %s43, 1
      %p276 = por %p274, %p275
      %p278 = scmp.ne.s32.totalorder %s263, %s277
      %p279 = scmp.eq.s32.totalorder %s43, 0
      %p280 = por %p278, %p279
      %s282 = sadd.s32 %s281, 1
      %p285 = scmp.eq.s32.totalorder %s37, 1
      %p286 = scmp.ne.s32.totalorder %s281, %s283
      %p287 = scmp.eq.s32.totalorder %s37, 0
      %p288 = por %p286, %p287
      %p289 = scmp.ne.s32.totalorder %s281, %s283
      %p290 = scmp.eq.s32.totalorder %s42, 1
      %p291 = por %p289, %p290
      %p292 = scmp.ne.s32.totalorder %s283, %s284
      %p293 = scmp.eq.s32.totalorder %s42, 0
      %p294 = por %p292, %p293
      %p295 = scmp.ne.s32.totalorder %s283, %s284
      %p296 = scmp.eq.s32.totalorder %s43, 1
      %p297 = por %p295, %p296
      %p299 = scmp.ne.s32.totalorder %s284, %s298
      %p300 = scmp.eq.s32.totalorder %s43, 0
      %p301 = por %p299, %p300
      %s303 = sadd.s32 %s302, 1
      %p306 = scmp.eq.s32.totalorder %s37, 1
      %p307 = scmp.ne.s32.totalorder %s302, %s304
      %p308 = scmp.eq.s32.totalorder %s37, 0
      %p309 = por %p307, %p308
      %p310 = scmp.ne.s32.totalorder %s302, %s304
      %p311 = scmp.eq.s32.totalorder %s42, 1
      %p312 = por %p310, %p311
      %p313 = scmp.ne.s32.totalorder %s304, %s305
      %p314 = scmp.eq.s32.totalorder %s42, 0
      %p315 = por %p313, %p314
      %p316 = scmp.ne.s32.totalorder %s304, %s305
      %p317 = scmp.eq.s32.totalorder %s43, 1
      %p318 = por %p316, %p317
      %p320 = scmp.ne.s32.totalorder %s305, %s319
      %p321 = scmp.eq.s32.totalorder %s43, 0
      %p322 = por %p320, %p321
      %s324 = sadd.s32 %s323, 1
      %p327 = scmp.eq.s32.totalorder %s37, 1
      %p328 = scmp.ne.s32.totalorder %s323, %s325
      %p329 = scmp.eq.s32.totalorder %s37, 0
      %p330 = por %p328, %p329
      %p331 = scmp.ne.s32.totalorder %s323, %s325
      %p332 = scmp.eq.s32.totalorder %s42, 1
      %p333 = por %p331, %p332
      %p334 = scmp.ne.s32.totalorder %s325, %s326
      %p335 = scmp.eq.s32.totalorder %s42, 0
      %p336 = por %p334, %p335
      %p337 = scmp.ne.s32.totalorder %s325, %s326
      %p338 = scmp.eq.s32.totalorder %s43, 1
      %p339 = por %p337, %p338
      %p341 = scmp.ne.s32.totalorder %s326, %s340
      %p342 = scmp.eq.s32.totalorder %s43, 0
      %p343 = por %p341, %p342
      %s345 = sadd.s32 %s344, 1
      %p348 = scmp.eq.s32.totalorder %s37, 1
      %p349 = scmp.ne.s32.totalorder %s344, %s346
      %p350 = scmp.eq.s32.totalorder %s37, 0
      %p351 = por %p349, %p350
      %p352 = scmp.ne.s32.totalorder %s344, %s346
      %p353 = scmp.eq.s32.totalorder %s42, 1
      %p354 = por %p352, %p353
      %p355 = scmp.ne.s32.totalorder %s346, %s347
      %p356 = scmp.eq.s32.totalorder %s42, 0
      %p357 = por %p355, %p356
      %p358 = scmp.ne.s32.totalorder %s346, %s347
      %p359 = scmp.eq.s32.totalorder %s43, 1
      %p360 = por %p358, %p359
      %p362 = scmp.ne.s32.totalorder %s347, %s361
      %p363 = scmp.eq.s32.totalorder %s43, 0
      %p364 = por %p362, %p363
      %s366 = sadd.s32 %s365, 1
      %p369 = scmp.eq.s32.totalorder %s37, 1
      %p370 = scmp.ne.s32.totalorder %s365, %s367
      %p371 = scmp.eq.s32.totalorder %s37, 0
      %p372 = por %p370, %p371
      %p373 = scmp.ne.s32.totalorder %s365, %s367
      %p374 = scmp.eq.s32.totalorder %s42, 1
      %p375 = por %p373, %p374
      %p376 = scmp.ne.s32.totalorder %s367, %s368
      %p377 = scmp.eq.s32.totalorder %s42, 0
      %p378 = por %p376, %p377
      %p379 = scmp.ne.s32.totalorder %s367, %s368
      %p380 = scmp.eq.s32.totalorder %s43, 1
      %p381 = por %p379, %p380
      %p383 = scmp.ne.s32.totalorder %s368, %s382
      %p384 = scmp.eq.s32.totalorder %s43, 0
      %p385 = por %p383, %p384
      %s387 = sadd.s32 %s386, 1
      %p390 = scmp.eq.s32.totalorder %s37, 1
      %p391 = scmp.ne.s32.totalorder %s386, %s388
      %p392 = scmp.eq.s32.totalorder %s37, 0
      %p393 = por %p391, %p392
      %p394 = scmp.ne.s32.totalorder %s386, %s388
      %p395 = scmp.eq.s32.totalorder %s42, 1
      %p396 = por %p394, %p395
      %p397 = scmp.ne.s32.totalorder %s388, %s389
      %p398 = scmp.eq.s32.totalorder %s42, 0
      %p399 = por %p397, %p398
      %p400 = scmp.ne.s32.totalorder %s388, %s389
      %p401 = scmp.eq.s32.totalorder %s43, 1
      %p402 = por %p400, %p401
      %p404 = scmp.ne.s32.totalorder %s389, %s403
      %p405 = scmp.eq.s32.totalorder %s43, 0
      %p406 = por %p404, %p405
      %s408 = sadd.s32 %s407, 1
      %p411 = scmp.eq.s32.totalorder %s37, 1
      %p412 = scmp.ne.s32.totalorder %s407, %s409
      %p413 = scmp.eq.s32.totalorder %s37, 0
      %p414 = por %p412, %p413
      %p415 = scmp.ne.s32.totalorder %s407, %s409
      %p416 = scmp.eq.s32.totalorder %s42, 1
      %p417 = por %p415, %p416
      %p418 = scmp.ne.s32.totalorder %s409, %s410
      %p419 = scmp.eq.s32.totalorder %s42, 0
      %p420 = por %p418, %p419
      %p421 = scmp.ne.s32.totalorder %s409, %s410
      %p422 = scmp.eq.s32.totalorder %s43, 1
      %p423 = por %p421, %p422
      %p425 = scmp.ne.s32.totalorder %s410, %s424
      %p426 = scmp.eq.s32.totalorder %s43, 0
      %p427 = por %p425, %p426
      %s428 = ssub.s32 %s37, %s44
      %p429 = scmp.eq.s32.totalorder %s428, 0
      %s431 = sadd.s32 %s430, 1
      %s432 = scalar_select %p429, %s430, %s431
      %p435 = pneg %p429
      %p436 = scmp.eq.s32.totalorder %s37, 1
      %p437 = por %p435, %p436
      %p438 = scmp.ne.s32.totalorder %s430, %s433
      %p439 = scmp.eq.s32.totalorder %s37, 0
      %p440 = por %p438, %p439
      %p441 = scmp.ne.s32.totalorder %s430, %s433
      %p442 = scmp.eq.s32.totalorder %s42, 1
      %p443 = por %p441, %p442
      %p444 = scmp.ne.s32.totalorder %s433, %s434
      %p445 = scmp.eq.s32.totalorder %s42, 0
      %p446 = por %p444, %p445
      %p447 = scmp.ne.s32.totalorder %s433, %s434
      %p448 = scmp.eq.s32.totalorder %s43, 1
      %p449 = por %p447, %p448
      %p451 = scmp.ne.s32.totalorder %s434, %s450
      %p452 = scmp.eq.s32.totalorder %s43, 0
      %p453 = por %p451, %p452
      %s454 = ssub.s32 %s37, %s44
      %p455 = scmp.eq.s32.totalorder %s454, 0
      %s457 = sadd.s32 %s456, 1
      %s458 = scalar_select %p455, %s456, %s457
      %p461 = pneg %p455
      %p462 = scmp.eq.s32.totalorder %s37, 1
      %p463 = por %p461, %p462
      %p464 = scmp.ne.s32.totalorder %s456, %s459
      %p465 = scmp.eq.s32.totalorder %s37, 0
      %p466 = por %p464, %p465
      %p467 = scmp.ne.s32.totalorder %s456, %s459
      %p468 = scmp.eq.s32.totalorder %s42, 1
      %p469 = por %p467, %p468
      %p470 = scmp.ne.s32.totalorder %s459, %s460
      %p471 = scmp.eq.s32.totalorder %s42, 0
      %p472 = por %p470, %p471
      %p473 = scmp.ne.s32.totalorder %s459, %s460
      %p474 = scmp.eq.s32.totalorder %s43, 1
      %p475 = por %p473, %p474
      %p477 = scmp.ne.s32.totalorder %s460, %s476
      %p478 = scmp.eq.s32.totalorder %s43, 0
      %p479 = por %p477, %p478
      %p480 = scmp.le.s32.totalorder 1, %s37
      %p481 = scmp.lt.s32.totalorder %s37, 3
      %p482 = pnand %p480, %p481
      %p483 = pneg %p482
      // Predicated region
      $region9: #{tpu_custom_call.1} parent=5 // pred_check
        _
      $region10: #{tpu_custom_call.1} parent=5 // pred_check_branch
        %485 = sbr.rel (%p482) target = $region12
      $region11: #{tpu_custom_call.1} parent=5 // pred_region
        %s486 = ssub.s32 %s37, 1
        // Predicated region
        $region13: #{tpu_custom_call.1} parent=11 // pred_check
          %p487 = pneg %p84
        $region14: #{tpu_custom_call.1} parent=11 // pred_check_branch
          %489 = sbr.rel (%p487) target = $region16
        $region15: #{tpu_custom_call.1} parent=11 // pred_region
          _
        $region16: #{tpu_custom_call.1} parent=11 // pred_fallthru
          _
        // Predicated region
        $region17: #{tpu_custom_call.1} parent=11 // pred_check
          %p490 = pneg %p105
        $region18: #{tpu_custom_call.1} parent=11 // pred_check_branch
          %492 = sbr.rel (%p490) target = $region20
        $region19: #{tpu_custom_call.1} parent=11 // pred_region
          _
        $region20: #{tpu_custom_call.1} parent=11 // pred_fallthru
          _
        // Predicated region
        $region21: #{tpu_custom_call.1} parent=11 // pred_check
          %p493 = pneg %p126
        $region22: #{tpu_custom_call.1} parent=11 // pred_check_branch
          %495 = sbr.rel (%p493) target = $region24
        $region23: #{tpu_custom_call.1} parent=11 // pred_region
          _
        $region24: #{tpu_custom_call.1} parent=11 // pred_fallthru
          _
        // Predicated region
        $region25: #{tpu_custom_call.1} parent=11 // pred_check
          %p496 = pneg %p147
        $region26: #{tpu_custom_call.1} parent=11 // pred_check_branch
          %498 = sbr.rel (%p496) target = $region28
        $region27: #{tpu_custom_call.1} parent=11 // pred_region
          _
        $region28: #{tpu_custom_call.1} parent=11 // pred_fallthru
          _
        // Predicated region
        $region29: #{tpu_custom_call.1} parent=11 // pred_check
          %p499 = pneg %p168
        $region30: #{tpu_custom_call.1} parent=11 // pred_check_branch
          %501 = sbr.rel (%p499) target = $region32
        $region31: #{tpu_custom_call.1} parent=11 // pred_region
          %s503 = ssub.s32 2048, 2048
          %504 = vsyncadd [#allocation8], %s503
          %s505 = sshll.u32 [#allocation7], 4
          %s506 = int_to_ptr.vmem [resolvable:$true] %s505
          %511 = dma.hbm_to_vmem [thread:$0]  %s5, 2048, %s506, [#allocation8], 128, 128, 8
        $region32: #{tpu_custom_call.1} parent=11 // pred_fallthru
          _
        // Predicated region
        $region33: #{tpu_custom_call.1} parent=11 // pred_check
          %p512 = pneg %p189
        $region34: #{tpu_custom_call.1} parent=11 // pred_check_branch
          %514 = sbr.rel (%p512) target = $region36
        $region35: #{tpu_custom_call.1} parent=11 // pred_region
          _
        $region36: #{tpu_custom_call.1} parent=11 // pred_fallthru
          _
        // Predicated region
        $region37: #{tpu_custom_call.1} parent=11 // pred_check
          %p515 = pneg %p210
        $region38: #{tpu_custom_call.1} parent=11 // pred_check_branch
          %517 = sbr.rel (%p515) target = $region40
        $region39: #{tpu_custom_call.1} parent=11 // pred_region
          _
        $region40: #{tpu_custom_call.1} parent=11 // pred_fallthru
          _
        // Predicated region
        $region41: #{tpu_custom_call.1} parent=11 // pred_check
          %p518 = pneg %p231
        $region42: #{tpu_custom_call.1} parent=11 // pred_check_branch
          %520 = sbr.rel (%p518) target = $region44
        $region43: #{tpu_custom_call.1} parent=11 // pred_region
          %s522 = ssub.s32 2048, 2048
          %523 = vsyncadd [#allocation8], %s522
          %s524 = sshll.u32 [#allocation9], 4
          %s525 = int_to_ptr.vmem [resolvable:$true] %s524
          %530 = dma.hbm_to_vmem [thread:$0]  %s8, 2048, %s525, [#allocation8], 128, 128, 8
        $region44: #{tpu_custom_call.1} parent=11 // pred_fallthru
          _
        // Predicated region
        $region45: #{tpu_custom_call.1} parent=11 // pred_check
          %p531 = pneg %p252
        $region46: #{tpu_custom_call.1} parent=11 // pred_check_branch
          %533 = sbr.rel (%p531) target = $region48
        $region47: #{tpu_custom_call.1} parent=11 // pred_region
          _
        $region48: #{tpu_custom_call.1} parent=11 // pred_fallthru
          _
        // Predicated region
        $region49: #{tpu_custom_call.1} parent=11 // pred_check
          %p534 = pneg %p273
        $region50: #{tpu_custom_call.1} parent=11 // pred_check_branch
          %536 = sbr.rel (%p534) target = $region52
        $region51: #{tpu_custom_call.1} parent=11 // pred_region
          _
        $region52: #{tpu_custom_call.1} parent=11 // pred_fallthru
          _
        // Predicated region
        $region53: #{tpu_custom_call.1} parent=11 // pred_check
          %p537 = pneg %p294
        $region54: #{tpu_custom_call.1} parent=11 // pred_check_branch
          %539 = sbr.rel (%p537) target = $region56
        $region55: #{tpu_custom_call.1} parent=11 // pred_region
          _
        $region56: #{tpu_custom_call.1} parent=11 // pred_fallthru
          _
        // Predicated region
        $region57: #{tpu_custom_call.1} parent=11 // pred_check
          %p540 = pneg %p315
        $region58: #{tpu_custom_call.1} parent=11 // pred_check_branch
          %542 = sbr.rel (%p540) target = $region60
        $region59: #{tpu_custom_call.1} parent=11 // pred_region
          %s544 = ssub.s32 1024, 1024
          %545 = vsyncadd [#allocation11], %s544
          %s546 = sshll.u32 [#allocation10], 4
          %s547 = int_to_ptr.vmem [resolvable:$true] %s546
          %552 = dma.hbm_to_vmem [thread:$0]  %s12, 1024, %s547, [#allocation11], 128, 128, 8
        $region60: #{tpu_custom_call.1} parent=11 // pred_fallthru
          _
        // Predicated region
        $region61: #{tpu_custom_call.1} parent=11 // pred_check
          %p553 = pneg %p336
        $region62: #{tpu_custom_call.1} parent=11 // pred_check_branch
          %555 = sbr.rel (%p553) target = $region64
        $region63: #{tpu_custom_call.1} parent=11 // pred_region
          _
        $region64: #{tpu_custom_call.1} parent=11 // pred_fallthru
          _
        // Predicated region
        $region65: #{tpu_custom_call.1} parent=11 // pred_check
          %p556 = pneg %p357
        $region66: #{tpu_custom_call.1} parent=11 // pred_check_branch
          %558 = sbr.rel (%p556) target = $region68
        $region67: #{tpu_custom_call.1} parent=11 // pred_region
          _
        $region68: #{tpu_custom_call.1} parent=11 // pred_fallthru
          _
        // Predicated region
        $region69: #{tpu_custom_call.1} parent=11 // pred_check
          %p559 = pneg %p378
        $region70: #{tpu_custom_call.1} parent=11 // pred_check_branch
          %561 = sbr.rel (%p559) target = $region72
        $region71: #{tpu_custom_call.1} parent=11 // pred_region
          _
        $region72: #{tpu_custom_call.1} parent=11 // pred_fallthru
          _
        // Predicated region
        $region73: #{tpu_custom_call.1} parent=11 // pred_check
          %p562 = pneg %p399
        $region74: #{tpu_custom_call.1} parent=11 // pred_check_branch
          %564 = sbr.rel (%p562) target = $region76
        $region75: #{tpu_custom_call.1} parent=11 // pred_region
          _
        $region76: #{tpu_custom_call.1} parent=11 // pred_fallthru
          _
        // Predicated region
        $region77: #{tpu_custom_call.1} parent=11 // pred_check
          %p565 = pneg %p420
        $region78: #{tpu_custom_call.1} parent=11 // pred_check_branch
          %567 = sbr.rel (%p565) target = $region80
        $region79: #{tpu_custom_call.1} parent=11 // pred_region
          _
        $region80: #{tpu_custom_call.1} parent=11 // pred_fallthru
          _
      $region12: #{tpu_custom_call.1} parent=5 // pred_fallthru
        _
      %p568 = scmp.lt.s32.totalorder %s37, 2
      // Predicated region
      $region81: #{tpu_custom_call.1} parent=5 // pred_check
        %p569 = pneg %p568
      $region82: #{tpu_custom_call.1} parent=5 // pred_check_branch
        %571 = sbr.rel (%p569) target = $region84
      $region83: #{tpu_custom_call.1} parent=5 // pred_region
        // Predicated region
        $region85: #{tpu_custom_call.1} parent=83 // pred_check
          %p572 = pneg %p57
        $region86: #{tpu_custom_call.1} parent=83 // pred_check_branch
          %574 = sbr.rel (%p572) target = $region88
        $region87: #{tpu_custom_call.1} parent=83 // pred_region
          %s575 = sand.u32 %s47, 1
          %s576 = scalar_lea.sflag [#allocation5], %s575
          %s577 = sand.u32 %s47, 1
          %s578 = smul.addr %s577, 8
          %s579 = scalar_lea.vmem [#allocation4], %s578
          %s581 = ssub.s32 128, 128
          %582 = vsyncadd %s576, %s581
          %s583 = smul.addr %s37, 128
          %s584 = scalar_lea.hbm %s0, %s583
          %s586 = sshll.u32 %s579, 4
          %s587 = int_to_ptr.vmem [resolvable:$true] %s586
          %589 = dma.hbm_to_vmem [thread:$0]  %s584, 128, %s587, %s576
        $region88: #{tpu_custom_call.1} parent=83 // pred_fallthru
          _
      $region84: #{tpu_custom_call.1} parent=5 // pred_fallthru
        _
      %p590 = scmp.le.s32.totalorder 1, %s37
      %p591 = scmp.lt.s32.totalorder %s37, 3
      %p592 = pnand %p590, %p591
      %p593 = pneg %p592
      // Predicated region
      $region89: #{tpu_custom_call.1} parent=5 // pred_check
        _
      $region90: #{tpu_custom_call.1} parent=5 // pred_check_branch
        %595 = sbr.rel (%p592) target = $region92
      $region91: #{tpu_custom_call.1} parent=5 // pred_region
        %s596 = ssub.s32 %s37, 1
        %s597 = sand.u32 %s50, 1
        %s598 = scalar_lea.sflag [#allocation5], %s597
        %s599 = sand.u32 %s50, 1
        %s600 = smul.addr %s599, 8
        %s601 = scalar_lea.vmem [#allocation4], %s600
        // Predicated region
        $region93: #{tpu_custom_call.1} parent=91 // pred_check
          %p602 = pneg %p63
        $region94: #{tpu_custom_call.1} parent=91 // pred_check_branch
          %604 = sbr.rel (%p602) target = $region96
        $region95: #{tpu_custom_call.1} parent=91 // pred_region
          %605 = dma.done %s598, 128
        $region96: #{tpu_custom_call.1} parent=91 // pred_fallthru
          _
        // Predicated region
        $region97: #{tpu_custom_call.1} parent=91 // pred_check
          %p606 = pneg %p168
        $region98: #{tpu_custom_call.1} parent=91 // pred_check_branch
          %608 = sbr.rel (%p606) target = $region100
        $region99: #{tpu_custom_call.1} parent=91 // pred_region
          %609 = dma.done [#allocation8], 2048
        $region100: #{tpu_custom_call.1} parent=91 // pred_fallthru
          _
        // Predicated region
        $region101: #{tpu_custom_call.1} parent=91 // pred_check
          %p610 = pneg %p231
        $region102: #{tpu_custom_call.1} parent=91 // pred_check_branch
          %612 = sbr.rel (%p610) target = $region104
        $region103: #{tpu_custom_call.1} parent=91 // pred_region
          %613 = dma.done [#allocation8], 2048
        $region104: #{tpu_custom_call.1} parent=91 // pred_fallthru
          _
        // Predicated region
        $region105: #{tpu_custom_call.1} parent=91 // pred_check
          %p614 = pneg %p315
        $region106: #{tpu_custom_call.1} parent=91 // pred_check_branch
          %616 = sbr.rel (%p614) target = $region108
        $region107: #{tpu_custom_call.1} parent=91 // pred_region
          %617 = dma.done [#allocation11], 1024
        $region108: #{tpu_custom_call.1} parent=91 // pred_fallthru
          _
        %s618 = sand.u32 %s50, 1
        %s619 = scalar_lea.sflag [#allocation5], %s618
        %s620 = sand.u32 %s50, 1
        %s621 = smul.addr %s620, 8
        %s622 = scalar_lea.vmem [#allocation4], %s621
        %p623 = pneg %p63
        %p624 = pneg %p60
        %p625 = pneg %p84
        %p626 = pneg %p81
        %p627 = pneg %p105
        %p628 = pneg %p102
        %p629 = pneg %p126
        %p630 = pneg %p123
        %p631 = pneg %p147
        %p632 = pneg %p144
        %p633 = pneg %p168
        %p634 = pneg %p165
        %p635 = pneg %p189
        %p636 = pneg %p186
        %p637 = pneg %p210
        %p638 = pneg %p207
        %p639 = pneg %p231
        %p640 = pneg %p228
        %p641 = pneg %p252
        %p642 = pneg %p249
        %p643 = pneg %p273
        %p644 = pneg %p270
        %p645 = pneg %p294
        %p646 = pneg %p291
        %p647 = pneg %p315
        %p648 = pneg %p312
        %p649 = pneg %p336
        %p650 = pneg %p333
        %p651 = pneg %p357
        %p652 = pneg %p354
        %p653 = pneg %p378
        %p654 = pneg %p375
        %p655 = pneg %p399
        %p656 = pneg %p396
        %p657 = pneg %p420
        %p658 = pneg %p417
        %p659 = pneg %p446
        %p660 = pneg %p443
        %s661 = sand.u32 %s433, 1
        %s662 = scalar_lea.sflag [#allocation6], %s661
        %s663 = sand.u32 %s433, 1
        %s664 = smul.addr %s663, 8
        %s665 = scalar_lea.vmem [#allocation12], %s664
        %p666 = pneg %p472
        %p667 = pneg %p469
        %s668 = sand.u32 %s459, 1
        %s669 = scalar_lea.sflag [#allocation14], %s668
        %s670 = sand.u32 %s459, 1
        %s671 = smul.addr %s670, 16
        %s672 = scalar_lea.vmem [#allocation13], %s671
        %v673 = vld [vmem:[%s601] sm:$0xff]
        %v674 = vld [vmem:[%s1] sm:$0xff]
        %v675 = vld [vmem:[%s1 + $0x8] sm:$0xff]
        %v676 = vld [vmem:[%s1 + $0x10] sm:$0xff]
        %v677 = vld [vmem:[%s1 + $0x18] sm:$0xff]
        %v678 = vld [vmem:[%s1 + $0x20] sm:$0xff]
        %v679 = vld [vmem:[%s1 + $0x28] sm:$0xff]
        %v680 = vld [vmem:[%s1 + $0x30] sm:$0xff]
        %v681 = vld [vmem:[%s1 + $0x38] sm:$0xff]
        %v682 = vld [vmem:[%s1 + $0x40] sm:$0xff]
        %v683 = vld [vmem:[%s1 + $0x48] sm:$0xff]
        %v684 = vld [vmem:[%s1 + $0x50] sm:$0xff]
        %v685 = vld [vmem:[%s1 + $0x58] sm:$0xff]
        %v686 = vld [vmem:[%s1 + $0x60] sm:$0xff]
        %v687 = vld [vmem:[%s1 + $0x68] sm:$0xff]
        %v688 = vld [vmem:[%s1 + $0x70] sm:$0xff]
        %v689 = vld [vmem:[%s1 + $0x78] sm:$0xff]
        %v690 = vld [vmem:[%s2] sm:$0x1]
        %v692 = vlaneseq
        %v693 = vshrl.u32 %v692, 7
        %v694 = vsub.s32 0, %v693
        %v695 = vrot.slane %v690, %v694
        %697 = vmatprep.subr.mxu0 0.0
        %698 = vmatpush1.msra.mxu0 %v689
        %699 = vmatprep.subr.mxu0 0.0
        %700 = vmatpush1.msra.mxu0 %v688
        %701 = vmatprep.subr.mxu0 0.0
        %702 = vmatpush1.msra.mxu0 %v687
        %703 = vmatprep.subr.mxu0 0.0
        %704 = vmatpush1.msra.mxu0 %v686
        %705 = vmatprep.subr.mxu0 0.0
        %706 = vmatpush1.msra.mxu0 %v685
        %707 = vmatprep.subr.mxu0 0.0
        %708 = vmatpush1.msra.mxu0 %v684
        %709 = vmatprep.subr.mxu0 0.0
        %710 = vmatpush1.msra.mxu0 %v683
        %711 = vmatprep.subr.mxu0 0.0
        %712 = vmatpush1.msra.mxu0 %v682
        %713 = vmatprep.subr.mxu0 0.0
        %714 = vmatpush1.msra.mxu0 %v681
        %715 = vmatprep.subr.mxu0 0.0
        %716 = vmatpush1.msra.mxu0 %v680
        %717 = vmatprep.subr.mxu0 0.0
        %718 = vmatpush1.msra.mxu0 %v679
        %719 = vmatprep.subr.mxu0 0.0
        %720 = vmatpush1.msra.mxu0 %v678
        %721 = vmatprep.subr.mxu0 0.0
        %722 = vmatpush1.msra.mxu0 %v677
        %723 = vmatprep.subr.mxu0 0.0
        %724 = vmatpush1.msra.mxu0 %v676
        %725 = vmatprep.subr.mxu0 0.0
        %726 = vmatpush1.msra.mxu0 %v675
        %727 = vmatprep.subr.mxu0 0.0
        %728 = vmatpush1.msra.mxu0 %v674
        %729 = vmatprep.subr.mxu0 0.0
        %730 = vmatpush2.msra.mxu0 0.0
        %731 = vmatprep.subr.mxu0 0.0
        %732 = vmatpush2.msra.mxu0 0.0
        %733 = vmatprep.subr.mxu0 0.0
        %734 = vmatpush2.msra.mxu0 0.0
        %735 = vmatprep.subr.mxu0 0.0
        %736 = vmatpush2.msra.mxu0 0.0
        %737 = vmatprep.subr.mxu0 0.0
        %738 = vmatpush2.msra.mxu0 0.0
        %739 = vmatprep.subr.mxu0 0.0
        %740 = vmatpush2.msra.mxu0 0.0
        %741 = vmatprep.subr.mxu0 0.0
        %742 = vmatpush2.msra.mxu0 0.0
        %743 = vmatprep.subr.mxu0 0.0
        %744 = vmatpush2.msra.mxu0 0.0
        %745 = vmatprep.subr.mxu0 0.0
        %746 = vmatpush2.msra.mxu0 0.0
        %747 = vmatprep.subr.mxu0 0.0
        %748 = vmatpush2.msra.mxu0 0.0
        %749 = vmatprep.subr.mxu0 0.0
        %750 = vmatpush2.msra.mxu0 0.0
        %751 = vmatprep.subr.mxu0 0.0
        %752 = vmatpush2.msra.mxu0 0.0
        %753 = vmatprep.subr.mxu0 0.0
        %754 = vmatpush2.msra.mxu0 0.0
        %755 = vmatprep.subr.mxu0 0.0
        %756 = vmatpush2.msra.mxu0 0.0
        %757 = vmatprep.subr.mxu0 0.0
        %758 = vmatpush2.msra.mxu0 0.0
        %759 = vmatprep.subr.mxu0 0.0
        %760 = vmatpush2.msra.mxu0 0.0
        %761 = vmatprep.mubr.f32.mxu0 0.0
        %762 = vmatmul.mubr.f32.gmra.mxu0 %v673
        %v763 = vpop.f32.mrf.mxu0
        %v764 = vadd.f32 %v695, %v763
        %v765 = vpop.f32.mrf.mxu0
        %766 = vdwg.mxu0
        %v767 = vld [vmem:[%s3] sm:$0xff]
        %v768 = vld [vmem:[%s3 + $0x8] sm:$0xff]
        %v769 = vld [vmem:[%s3 + $0x10] sm:$0xff]
        %v770 = vld [vmem:[%s3 + $0x18] sm:$0xff]
        %v771 = vld [vmem:[%s3 + $0x20] sm:$0xff]
        %v772 = vld [vmem:[%s3 + $0x28] sm:$0xff]
        %v773 = vld [vmem:[%s3 + $0x30] sm:$0xff]
        %v774 = vld [vmem:[%s3 + $0x38] sm:$0xff]
        %v775 = vld [vmem:[%s3 + $0x40] sm:$0xff]
        %v776 = vld [vmem:[%s3 + $0x48] sm:$0xff]
        %v777 = vld [vmem:[%s3 + $0x50] sm:$0xff]
        %v778 = vld [vmem:[%s3 + $0x58] sm:$0xff]
        %v779 = vld [vmem:[%s3 + $0x60] sm:$0xff]
        %v780 = vld [vmem:[%s3 + $0x68] sm:$0xff]
        %v781 = vld [vmem:[%s3 + $0x70] sm:$0xff]
        %v782 = vld [vmem:[%s3 + $0x78] sm:$0xff]
        %v783 = vld [vmem:[%s4] sm:$0x1]
        %v785 = vlaneseq
        %v786 = vshrl.u32 %v785, 7
        %v787 = vsub.s32 0, %v786
        %v788 = vrot.slane %v783, %v787
        %790 = vmatprep.subr.mxu0 0.0
        %791 = vmatpush1.msra.mxu0 %v782
        %792 = vmatprep.subr.mxu0 0.0
        %793 = vmatpush1.msra.mxu0 %v781
        %794 = vmatprep.subr.mxu0 0.0
        %795 = vmatpush1.msra.mxu0 %v780
        %796 = vmatprep.subr.mxu0 0.0
        %797 = vmatpush1.msra.mxu0 %v779
        %798 = vmatprep.subr.mxu0 0.0
        %799 = vmatpush1.msra.mxu0 %v778
        %800 = vmatprep.subr.mxu0 0.0
        %801 = vmatpush1.msra.mxu0 %v777
        %802 = vmatprep.subr.mxu0 0.0
        %803 = vmatpush1.msra.mxu0 %v776
        %804 = vmatprep.subr.mxu0 0.0
        %805 = vmatpush1.msra.mxu0 %v775
        %806 = vmatprep.subr.mxu0 0.0
        %807 = vmatpush1.msra.mxu0 %v774
        %808 = vmatprep.subr.mxu0 0.0
        %809 = vmatpush1.msra.mxu0 %v773
        %810 = vmatprep.subr.mxu0 0.0
        %811 = vmatpush1.msra.mxu0 %v772
        %812 = vmatprep.subr.mxu0 0.0
        %813 = vmatpush1.msra.mxu0 %v771
        %814 = vmatprep.subr.mxu0 0.0
        %815 = vmatpush1.msra.mxu0 %v770
        %816 = vmatprep.subr.mxu0 0.0
        %817 = vmatpush1.msra.mxu0 %v769
        %818 = vmatprep.subr.mxu0 0.0
        %819 = vmatpush1.msra.mxu0 %v768
        %820 = vmatprep.subr.mxu0 0.0
        %821 = vmatpush1.msra.mxu0 %v767
        %822 = vmatprep.subr.mxu0 0.0
        %823 = vmatpush2.msra.mxu0 0.0
        %824 = vmatprep.subr.mxu0 0.0
        %825 = vmatpush2.msra.mxu0 0.0
        %826 = vmatprep.subr.mxu0 0.0
        %827 = vmatpush2.msra.mxu0 0.0
        %828 = vmatprep.subr.mxu0 0.0
        %829 = vmatpush2.msra.mxu0 0.0
        %830 = vmatprep.subr.mxu0 0.0
        %831 = vmatpush2.msra.mxu0 0.0
        %832 = vmatprep.subr.mxu0 0.0
        %833 = vmatpush2.msra.mxu0 0.0
        %834 = vmatprep.subr.mxu0 0.0
        %835 = vmatpush2.msra.mxu0 0.0
        %836 = vmatprep.subr.mxu0 0.0
        %837 = vmatpush2.msra.mxu0 0.0
        %838 = vmatprep.subr.mxu0 0.0
        %839 = vmatpush2.msra.mxu0 0.0
        %840 = vmatprep.subr.mxu0 0.0
        %841 = vmatpush2.msra.mxu0 0.0
        %842 = vmatprep.subr.mxu0 0.0
        %843 = vmatpush2.msra.mxu0 0.0
        %844 = vmatprep.subr.mxu0 0.0
        %845 = vmatpush2.msra.mxu0 0.0
        %846 = vmatprep.subr.mxu0 0.0
        %847 = vmatpush2.msra.mxu0 0.0
        %848 = vmatprep.subr.mxu0 0.0
        %849 = vmatpush2.msra.mxu0 0.0
        %850 = vmatprep.subr.mxu0 0.0
        %851 = vmatpush2.msra.mxu0 0.0
        %852 = vmatprep.subr.mxu0 0.0
        %853 = vmatpush2.msra.mxu0 0.0
        %854 = vmatprep.mubr.f32.mxu0 0.0
        %855 = vmatmul.mubr.f32.gmra.mxu0 %v673
        %v856 = vpop.f32.mrf.mxu0
        %v857 = vadd.f32 %v788, %v856
        %v858 = vpop.f32.mrf.mxu0
        %859 = vdwg.mxu0
        %v860 = vld [vmem:[#allocation7] sm:$0xff]
        %v861 = vld [vmem:[#allocation7 + $0x8] sm:$0xff]
        %v862 = vld [vmem:[#allocation7 + $0x10] sm:$0xff]
        %v863 = vld [vmem:[#allocation7 + $0x18] sm:$0xff]
        %v864 = vld [vmem:[#allocation7 + $0x20] sm:$0xff]
        %v865 = vld [vmem:[#allocation7 + $0x28] sm:$0xff]
        %v866 = vld [vmem:[#allocation7 + $0x30] sm:$0xff]
        %v867 = vld [vmem:[#allocation7 + $0x38] sm:$0xff]
        %v868 = vld [vmem:[#allocation7 + $0x40] sm:$0xff]
        %v869 = vld [vmem:[#allocation7 + $0x48] sm:$0xff]
        %v870 = vld [vmem:[#allocation7 + $0x50] sm:$0xff]
        %v871 = vld [vmem:[#allocation7 + $0x58] sm:$0xff]
        %v872 = vld [vmem:[#allocation7 + $0x60] sm:$0xff]
        %v873 = vld [vmem:[#allocation7 + $0x68] sm:$0xff]
        %v874 = vld [vmem:[#allocation7 + $0x70] sm:$0xff]
        %v875 = vld [vmem:[#allocation7 + $0x78] sm:$0xff]
        %v876 = vld [vmem:[%s6] sm:$0x1]
        %v878 = vlaneseq
        %v879 = vshrl.u32 %v878, 7
        %v880 = vsub.s32 0, %v879
        %v881 = vrot.slane %v876, %v880
        %883 = vmatprep.subr.mxu0 0.0
        %884 = vmatpush1.msra.mxu0 %v875
        %885 = vmatprep.subr.mxu0 0.0
        %886 = vmatpush1.msra.mxu0 %v874
        %887 = vmatprep.subr.mxu0 0.0
        %888 = vmatpush1.msra.mxu0 %v873
        %889 = vmatprep.subr.mxu0 0.0
        %890 = vmatpush1.msra.mxu0 %v872
        %891 = vmatprep.subr.mxu0 0.0
        %892 = vmatpush1.msra.mxu0 %v871
        %893 = vmatprep.subr.mxu0 0.0
        %894 = vmatpush1.msra.mxu0 %v870
        %895 = vmatprep.subr.mxu0 0.0
        %896 = vmatpush1.msra.mxu0 %v869
        %897 = vmatprep.subr.mxu0 0.0
        %898 = vmatpush1.msra.mxu0 %v868
        %899 = vmatprep.subr.mxu0 0.0
        %900 = vmatpush1.msra.mxu0 %v867
        %901 = vmatprep.subr.mxu0 0.0
        %902 = vmatpush1.msra.mxu0 %v866
        %903 = vmatprep.subr.mxu0 0.0
        %904 = vmatpush1.msra.mxu0 %v865
        %905 = vmatprep.subr.mxu0 0.0
        %906 = vmatpush1.msra.mxu0 %v864
        %907 = vmatprep.subr.mxu0 0.0
        %908 = vmatpush1.msra.mxu0 %v863
        %909 = vmatprep.subr.mxu0 0.0
        %910 = vmatpush1.msra.mxu0 %v862
        %911 = vmatprep.subr.mxu0 0.0
        %912 = vmatpush1.msra.mxu0 %v861
        %913 = vmatprep.subr.mxu0 0.0
        %914 = vmatpush1.msra.mxu0 %v860
        %915 = vmatprep.subr.mxu0 0.0
        %916 = vmatpush2.msra.mxu0 0.0
        %917 = vmatprep.subr.mxu0 0.0
        %918 = vmatpush2.msra.mxu0 0.0
        %919 = vmatprep.subr.mxu0 0.0
        %920 = vmatpush2.msra.mxu0 0.0
        %921 = vmatprep.subr.mxu0 0.0
        %922 = vmatpush2.msra.mxu0 0.0
        %923 = vmatprep.subr.mxu0 0.0
        %924 = vmatpush2.msra.mxu0 0.0
        %925 = vmatprep.subr.mxu0 0.0
        %926 = vmatpush2.msra.mxu0 0.0
        %927 = vmatprep.subr.mxu0 0.0
        %928 = vmatpush2.msra.mxu0 0.0
        %929 = vmatprep.subr.mxu0 0.0
        %930 = vmatpush2.msra.mxu0 0.0
        %931 = vmatprep.subr.mxu0 0.0
        %932 = vmatpush2.msra.mxu0 0.0
        %933 = vmatprep.subr.mxu0 0.0
        %934 = vmatpush2.msra.mxu0 0.0
        %935 = vmatprep.subr.mxu0 0.0
        %936 = vmatpush2.msra.mxu0 0.0
        %937 = vmatprep.subr.mxu0 0.0
        %938 = vmatpush2.msra.mxu0 0.0
        %939 = vmatprep.subr.mxu0 0.0
        %940 = vmatpush2.msra.mxu0 0.0
        %941 = vmatprep.subr.mxu0 0.0
        %942 = vmatpush2.msra.mxu0 0.0
        %943 = vmatprep.subr.mxu0 0.0
        %944 = vmatpush2.msra.mxu0 0.0
        %945 = vmatprep.subr.mxu0 0.0
        %946 = vmatpush2.msra.mxu0 0.0
        %947 = vmatprep.mubr.f32.mxu0 0.0
        %948 = vmatmul.mubr.f32.gmra.mxu0 %v673
        %v949 = vpop.f32.mrf.mxu0
        %v950 = vadd.f32 %v881, %v949
        %v951 = vpop.f32.mrf.mxu0
        %952 = vdwg.mxu0
        %v953 = vmul.f32 %v764, 0.125
        %v954 = vlaneseq
        %v955 = vshrl.u32 %v954, 7
        %v956 = vlaneseq
        %v957 = vand.u32 %v956, 127
        %v958 = vsub.s32 7, %v955
        %v959 = vld [vmem:[%s7] sm:$0xff]
        %v960 = vld [vmem:[%s7 + $0x8] sm:$0xff]
        %v961 = vld [vmem:[%s7 + $0x10] sm:$0xff]
        %v962 = vld [vmem:[%s7 + $0x18] sm:$0xff]
        %v963 = vld [vmem:[%s7 + $0x20] sm:$0xff]
        %v964 = vld [vmem:[%s7 + $0x28] sm:$0xff]
        %v965 = vld [vmem:[%s7 + $0x30] sm:$0xff]
        %v966 = vld [vmem:[%s7 + $0x38] sm:$0xff]
        %vm967 = vcmask 523264
        %v969 = vsel %vm967, %v953, 0
        %971 = vmatprep.subr.mxu0 0.0
        %972 = vmatpush1.msra.mxu0 0.0
        %973 = vmatprep.subr.mxu0 0.0
        %974 = vmatpush1.msra.mxu0 0.0
        %975 = vmatprep.subr.mxu0 0.0
        %976 = vmatpush1.msra.mxu0 0.0
        %977 = vmatprep.subr.mxu0 0.0
        %978 = vmatpush1.msra.mxu0 0.0
        %979 = vmatprep.subr.mxu0 0.0
        %980 = vmatpush1.msra.mxu0 0.0
        %981 = vmatprep.subr.mxu0 0.0
        %982 = vmatpush1.msra.mxu0 0.0
        %983 = vmatprep.subr.mxu0 0.0
        %984 = vmatpush1.msra.mxu0 0.0
        %985 = vmatprep.subr.mxu0 0.0
        %986 = vmatpush1.msra.mxu0 0.0
        %987 = vmatprep.subr.mxu0 0.0
        %988 = vmatpush1.msra.mxu0 %v966
        %989 = vmatprep.subr.mxu0 0.0
        %990 = vmatpush1.msra.mxu0 %v965
        %991 = vmatprep.subr.mxu0 0.0
        %992 = vmatpush1.msra.mxu0 %v964
        %993 = vmatprep.subr.mxu0 0.0
        %994 = vmatpush1.msra.mxu0 %v963
        %995 = vmatprep.subr.mxu0 0.0
        %996 = vmatpush1.msra.mxu0 %v962
        %997 = vmatprep.subr.mxu0 0.0
        %998 = vmatpush1.msra.mxu0 %v961
        %999 = vmatprep.subr.mxu0 0.0
        %1000 = vmatpush1.msra.mxu0 %v960
        %1001 = vmatprep.subr.mxu0 0.0
        %1002 = vmatpush1.msra.mxu0 %v959
        %1003 = vmatprep.subr.mxu0 0.0
        %1004 = vmatpush2.msra.mxu0 0.0
        %1005 = vmatprep.subr.mxu0 0.0
        %1006 = vmatpush2.msra.mxu0 0.0
        %1007 = vmatprep.subr.mxu0 0.0
        %1008 = vmatpush2.msra.mxu0 0.0
        %1009 = vmatprep.subr.mxu0 0.0
        %1010 = vmatpush2.msra.mxu0 0.0
        %1011 = vmatprep.subr.mxu0 0.0
        %1012 = vmatpush2.msra.mxu0 0.0
        %1013 = vmatprep.subr.mxu0 0.0
        %1014 = vmatpush2.msra.mxu0 0.0
        %1015 = vmatprep.subr.mxu0 0.0
        %1016 = vmatpush2.msra.mxu0 0.0
        %1017 = vmatprep.subr.mxu0 0.0
        %1018 = vmatpush2.msra.mxu0 0.0
        %1019 = vmatprep.subr.mxu0 0.0
        %1020 = vmatpush2.msra.mxu0 0.0
        %1021 = vmatprep.subr.mxu0 0.0
        %1022 = vmatpush2.msra.mxu0 0.0
        %1023 = vmatprep.subr.mxu0 0.0
        %1024 = vmatpush2.msra.mxu0 0.0
        %1025 = vmatprep.subr.mxu0 0.0
        %1026 = vmatpush2.msra.mxu0 0.0
        %1027 = vmatprep.subr.mxu0 0.0
        %1028 = vmatpush2.msra.mxu0 0.0
        %1029 = vmatprep.subr.mxu0 0.0
        %1030 = vmatpush2.msra.mxu0 0.0
        %1031 = vmatprep.subr.mxu0 0.0
        %1032 = vmatpush2.msra.mxu0 0.0
        %1033 = vmatprep.subr.mxu0 0.0
        %1034 = vmatpush2.msra.mxu0 0.0
        %1035 = vmatprep.mubr.f32.mxu0 0.0
        %1036 = vmatmul.mubr.f32.gmra.mxu0 %v969
        %v1037 = vpop.f32.mrf.mxu0
        %v1038 = vadd.f32 0.0, %v1037
        %v1039 = vpop.f32.mrf.mxu0
        %1040 = vdwg.mxu0
        %1042 = vrot.lane.b32.xlu0 %v1038, 127
        %v1043 = vpop.permute.xlu0 %1042
        %vm1045 = vcmask 56320
        %1046 = vst.msk [vmem:[#allocation3] sm:$0xff] %vm1045, %v1043
        %1047 = vrot.lane.b32.xlu0 %v1038, 7
        %v1048 = vpop.permute.xlu0 %1047
        %vm1050 = vcmask 64568
        %1051 = vst.msk [vmem:[#allocation3] sm:$0xff] %vm1050, %v1048
        %v1052 = vand.u32 %v958, 1
        %vm1053 = vcmp.ne.s32.totalorder %v1052, 0
        %v1054 = vld [vmem:[#allocation3] sm:$0xff]
        %v1055 = vsel %vm1053, %v1054, %v1038
        %1057 = vrot.lane.b32.xlu0 %v1055, 126
        %v1058 = vpop.permute.xlu0 %1057
        %vm1060 = vcmask 48128
        %1061 = vst.msk [vmem:[#allocation3] sm:$0xff] %vm1060, %v1058
        %1062 = vrot.lane.b32.xlu0 %v1055, 6
        %v1063 = vpop.permute.xlu0 %1062
        %vm1065 = vcmask 64560
        %1066 = vst.msk [vmem:[#allocation3] sm:$0xff] %vm1065, %v1063
        %v1067 = vand.u32 %v958, 2
        %vm1068 = vcmp.ne.s32.totalorder %v1067, 0
        %v1069 = vld [vmem:[#allocation3] sm:$0xff]
        %v1070 = vsel %vm1068, %v1069, %v1055
        %1072 = vrot.lane.b32.xlu0 %v1070, 124
        %v1073 = vpop.permute.xlu0 %1072
        %vm1075 = vcmask 31744
        %1076 = vst.msk [vmem:[#allocation3] sm:$0xff] %vm1075, %v1073
        %1077 = vrot.lane.b32.xlu0 %v1070, 4
        %v1078 = vpop.permute.xlu0 %1077
        %vm1080 = vcmask 64544
        %1081 = vst.msk [vmem:[#allocation3] sm:$0xff] %vm1080, %v1078
        %v1082 = vand.u32 %v958, 4
        %vm1083 = vcmp.ne.s32.totalorder %v1082, 0
        %v1084 = vld [vmem:[#allocation3] sm:$0xff]
        %v1085 = vsel %vm1083, %v1084, %v1070
        %vm1086 = vcmp.le.s32.totalorder %v957, %v955
        %v1087 = vsel %vm1086, %v1085, 0.0
        %v1089 = vsel %vm967, %v857, 0
        %1091 = vmatprep.subr.mxu0 0.0
        %1092 = vmatpush1.xpose.msra.mxu0 0.0
        %1093 = vmatprep.subr.mxu0 0.0
        %1094 = vmatpush1.xpose.msra.mxu0 0.0
        %1095 = vmatprep.subr.mxu0 0.0
        %1096 = vmatpush1.xpose.msra.mxu0 0.0
        %1097 = vmatprep.subr.mxu0 0.0
        %1098 = vmatpush1.xpose.msra.mxu0 0.0
        %1099 = vmatprep.subr.mxu0 0.0
        %1100 = vmatpush1.xpose.msra.mxu0 0.0
        %1101 = vmatprep.subr.mxu0 0.0
        %1102 = vmatpush1.xpose.msra.mxu0 0.0
        %1103 = vmatprep.subr.mxu0 0.0
        %1104 = vmatpush1.xpose.msra.mxu0 0.0
        %1105 = vmatprep.subr.mxu0 0.0
        %1106 = vmatpush1.xpose.msra.mxu0 0.0
        %1107 = vmatprep.subr.mxu0 0.0
        %1108 = vmatpush1.xpose.msra.mxu0 0.0
        %1109 = vmatprep.subr.mxu0 0.0
        %1110 = vmatpush1.xpose.msra.mxu0 0.0
        %1111 = vmatprep.subr.mxu0 0.0
        %1112 = vmatpush1.xpose.msra.mxu0 0.0
        %1113 = vmatprep.subr.mxu0 0.0
        %1114 = vmatpush1.xpose.msra.mxu0 0.0
        %1115 = vmatprep.subr.mxu0 0.0
        %1116 = vmatpush1.xpose.msra.mxu0 0.0
        %1117 = vmatprep.subr.mxu0 0.0
        %1118 = vmatpush1.xpose.msra.mxu0 0.0
        %1119 = vmatprep.subr.mxu0 0.0
        %1120 = vmatpush1.xpose.msra.mxu0 0.0
        %1121 = vmatprep.subr.mxu0 0.0
        %1122 = vmatpush1.xpose.msra.mxu0 %v1089
        %1123 = vmatprep.subr.mxu0 0.0
        %1124 = vmatpush2.xpose.msra.mxu0 0.0
        %1125 = vmatprep.subr.mxu0 0.0
        %1126 = vmatpush2.xpose.msra.mxu0 0.0
        %1127 = vmatprep.subr.mxu0 0.0
        %1128 = vmatpush2.xpose.msra.mxu0 0.0
        %1129 = vmatprep.subr.mxu0 0.0
        %1130 = vmatpush2.xpose.msra.mxu0 0.0
        %1131 = vmatprep.subr.mxu0 0.0
        %1132 = vmatpush2.xpose.msra.mxu0 0.0
        %1133 = vmatprep.subr.mxu0 0.0
        %1134 = vmatpush2.xpose.msra.mxu0 0.0
        %1135 = vmatprep.subr.mxu0 0.0
        %1136 = vmatpush2.xpose.msra.mxu0 0.0
        %1137 = vmatprep.subr.mxu0 0.0
        %1138 = vmatpush2.xpose.msra.mxu0 0.0
        %1139 = vmatprep.subr.mxu0 0.0
        %1140 = vmatpush2.xpose.msra.mxu0 0.0
        %1141 = vmatprep.subr.mxu0 0.0
        %1142 = vmatpush2.xpose.msra.mxu0 0.0
        %1143 = vmatprep.subr.mxu0 0.0
        %1144 = vmatpush2.xpose.msra.mxu0 0.0
        %1145 = vmatprep.subr.mxu0 0.0
        %1146 = vmatpush2.xpose.msra.mxu0 0.0
        %1147 = vmatprep.subr.mxu0 0.0
        %1148 = vmatpush2.xpose.msra.mxu0 0.0
        %1149 = vmatprep.subr.mxu0 0.0
        %1150 = vmatpush2.xpose.msra.mxu0 0.0
        %1151 = vmatprep.subr.mxu0 0.0
        %1152 = vmatpush2.xpose.msra.mxu0 0.0
        %1153 = vmatprep.subr.mxu0 0.0
        %1154 = vmatpush2.xpose.msra.mxu0 0.0
        %1155 = vmatprep.mubr.f32.mxu0 0.0
        %1156 = vmatmul.mubr.f32.gmra.mxu0 %v969
        %v1157 = vpop.f32.mrf.mxu0
        %v1158 = vadd.f32 %v1087, %v1157
        %v1159 = vpop.f32.mrf.mxu0
        %1160 = vdwg.mxu0
        %vm1161 = vcmask 64512
        %v1162 = vsel %vm1161, %v1158, -inf
        %1163 = vmax.xlane.f32.xlu0 %v1162
        %v1164 = vpop.xlane.xlu0 %1163
        %v1165 = vsub.f32 %v1158, %v1164
        %v1166 = vmul.f32 %v1165, 1.442695
        %v1167 = vpow.pop %v1166
        %v1168 = vsel %vm1161, %v1167, 0.0
        %1169 = vadd.xlane.f32.xlu0 %v1168
        %v1170 = vpop.xlane.xlu0 %1169
        %v1171 = vrcp.pop %v1170
        %v1172 = vmul.f32 %v1167, %v1171
        %1173 = vst.msk [vmem:[%s672] sm:$0xff] %vm1161, %v1172
        %v1175 = vsel %vm1161, %v1172, 0
        %1177 = vmatprep.subr.mxu0 0.0
        %1178 = vmatpush1.msra.mxu0 0.0
        %1179 = vmatprep.subr.mxu0 0.0
        %1180 = vmatpush1.msra.mxu0 0.0
        %1181 = vmatprep.subr.mxu0 0.0
        %1182 = vmatpush1.msra.mxu0 0.0
        %1183 = vmatprep.subr.mxu0 0.0
        %1184 = vmatpush1.msra.mxu0 0.0
        %1185 = vmatprep.subr.mxu0 0.0
        %1186 = vmatpush1.msra.mxu0 0.0
        %1187 = vmatprep.subr.mxu0 0.0
        %1188 = vmatpush1.msra.mxu0 0.0
        %1189 = vmatprep.subr.mxu0 0.0
        %1190 = vmatpush1.msra.mxu0 0.0
        %1191 = vmatprep.subr.mxu0 0.0
        %1192 = vmatpush1.msra.mxu0 0.0
        %1193 = vmatprep.subr.mxu0 0.0
        %1194 = vmatpush1.msra.mxu0 0.0
        %1195 = vmatprep.subr.mxu0 0.0
        %1196 = vmatpush1.msra.mxu0 0.0
        %1197 = vmatprep.subr.mxu0 0.0
        %1198 = vmatpush1.msra.mxu0 0.0
        %1199 = vmatprep.subr.mxu0 0.0
        %1200 = vmatpush1.msra.mxu0 0.0
        %1201 = vmatprep.subr.mxu0 0.0
        %1202 = vmatpush1.msra.mxu0 0.0
        %1203 = vmatprep.subr.mxu0 0.0
        %1204 = vmatpush1.msra.mxu0 0.0
        %1205 = vmatprep.subr.mxu0 0.0
        %1206 = vmatpush1.msra.mxu0 0.0
        %1207 = vmatprep.subr.mxu0 0.0
        %1208 = vmatpush1.msra.mxu0 %v950
        %1209 = vmatprep.subr.mxu0 0.0
        %1210 = vmatpush2.msra.mxu0 0.0
        %1211 = vmatprep.subr.mxu0 0.0
        %1212 = vmatpush2.msra.mxu0 0.0
        %1213 = vmatprep.subr.mxu0 0.0
        %1214 = vmatpush2.msra.mxu0 0.0
        %1215 = vmatprep.subr.mxu0 0.0
        %1216 = vmatpush2.msra.mxu0 0.0
        %1217 = vmatprep.subr.mxu0 0.0
        %1218 = vmatpush2.msra.mxu0 0.0
        %1219 = vmatprep.subr.mxu0 0.0
        %1220 = vmatpush2.msra.mxu0 0.0
        %1221 = vmatprep.subr.mxu0 0.0
        %1222 = vmatpush2.msra.mxu0 0.0
        %1223 = vmatprep.subr.mxu0 0.0
        %1224 = vmatpush2.msra.mxu0 0.0
        %1225 = vmatprep.subr.mxu0 0.0
        %1226 = vmatpush2.msra.mxu0 0.0
        %1227 = vmatprep.subr.mxu0 0.0
        %1228 = vmatpush2.msra.mxu0 0.0
        %1229 = vmatprep.subr.mxu0 0.0
        %1230 = vmatpush2.msra.mxu0 0.0
        %1231 = vmatprep.subr.mxu0 0.0
        %1232 = vmatpush2.msra.mxu0 0.0
        %1233 = vmatprep.subr.mxu0 0.0
        %1234 = vmatpush2.msra.mxu0 0.0
        %1235 = vmatprep.subr.mxu0 0.0
        %1236 = vmatpush2.msra.mxu0 0.0
        %1237 = vmatprep.subr.mxu0 0.0
        %1238 = vmatpush2.msra.mxu0 0.0
        %1239 = vmatprep.subr.mxu0 0.0
        %1240 = vmatpush2.msra.mxu0 0.0
        %1241 = vmatprep.mubr.f32.mxu0 0.0
        %1242 = vmatmul.mubr.f32.gmra.mxu0 %v1175
        %v1243 = vpop.f32.mrf.mxu0
        %v1244 = vadd.f32 0.0, %v1243
        %v1245 = vpop.f32.mrf.mxu0
        %1246 = vdwg.mxu0
        %1247 = vst.msk [vmem:[#allocation2] sm:$0xff] %vm967, %v1244
        %v1248 = vld [vmem:[%s7] sm:$0xff]
        %v1249 = vld [vmem:[%s7 + $0x8] sm:$0xff]
        %v1250 = vld [vmem:[%s7 + $0x10] sm:$0xff]
        %v1251 = vld [vmem:[%s7 + $0x18] sm:$0xff]
        %v1252 = vld [vmem:[%s7 + $0x20] sm:$0xff]
        %v1253 = vld [vmem:[%s7 + $0x28] sm:$0xff]
        %v1254 = vld [vmem:[%s7 + $0x30] sm:$0xff]
        %v1255 = vld [vmem:[%s7 + $0x38] sm:$0xff]
        %1256 = vrot.lane.b32.xlu0 %v953, 64
        %v1257 = vpop.permute.xlu0 %1256
        %v1258 = vsel %vm967, %v1257, 0
        %1260 = vmatprep.subr.mxu0 0.0
        %1261 = vmatpush1.msra.mxu0 0.0
        %1262 = vmatprep.subr.mxu0 0.0
        %1263 = vmatpush1.msra.mxu0 0.0
        %1264 = vmatprep.subr.mxu0 0.0
        %1265 = vmatpush1.msra.mxu0 0.0
        %1266 = vmatprep.subr.mxu0 0.0
        %1267 = vmatpush1.msra.mxu0 0.0
        %1268 = vmatprep.subr.mxu0 0.0
        %1269 = vmatpush1.msra.mxu0 0.0
        %1270 = vmatprep.subr.mxu0 0.0
        %1271 = vmatpush1.msra.mxu0 0.0
        %1272 = vmatprep.subr.mxu0 0.0
        %1273 = vmatpush1.msra.mxu0 0.0
        %1274 = vmatprep.subr.mxu0 0.0
        %1275 = vmatpush1.msra.mxu0 0.0
        %1276 = vmatprep.subr.mxu0 0.0
        %1277 = vmatpush1.msra.mxu0 %v1255
        %1278 = vmatprep.subr.mxu0 0.0
        %1279 = vmatpush1.msra.mxu0 %v1254
        %1280 = vmatprep.subr.mxu0 0.0
        %1281 = vmatpush1.msra.mxu0 %v1253
        %1282 = vmatprep.subr.mxu0 0.0
        %1283 = vmatpush1.msra.mxu0 %v1252
        %1284 = vmatprep.subr.mxu0 0.0
        %1285 = vmatpush1.msra.mxu0 %v1251
        %1286 = vmatprep.subr.mxu0 0.0
        %1287 = vmatpush1.msra.mxu0 %v1250
        %1288 = vmatprep.subr.mxu0 0.0
        %1289 = vmatpush1.msra.mxu0 %v1249
        %1290 = vmatprep.subr.mxu0 0.0
        %1291 = vmatpush1.msra.mxu0 %v1248
        %1292 = vmatprep.subr.mxu0 0.0
        %1293 = vmatpush2.msra.mxu0 0.0
        %1294 = vmatprep.subr.mxu0 0.0
        %1295 = vmatpush2.msra.mxu0 0.0
        %1296 = vmatprep.subr.mxu0 0.0
        %1297 = vmatpush2.msra.mxu0 0.0
        %1298 = vmatprep.subr.mxu0 0.0
        %1299 = vmatpush2.msra.mxu0 0.0
        %1300 = vmatprep.subr.mxu0 0.0
        %1301 = vmatpush2.msra.mxu0 0.0
        %1302 = vmatprep.subr.mxu0 0.0
        %1303 = vmatpush2.msra.mxu0 0.0
        %1304 = vmatprep.subr.mxu0 0.0
        %1305 = vmatpush2.msra.mxu0 0.0
        %1306 = vmatprep.subr.mxu0 0.0
        %1307 = vmatpush2.msra.mxu0 0.0
        %1308 = vmatprep.subr.mxu0 0.0
        %1309 = vmatpush2.msra.mxu0 0.0
        %1310 = vmatprep.subr.mxu0 0.0
        %1311 = vmatpush2.msra.mxu0 0.0
        %1312 = vmatprep.subr.mxu0 0.0
        %1313 = vmatpush2.msra.mxu0 0.0
        %1314 = vmatprep.subr.mxu0 0.0
        %1315 = vmatpush2.msra.mxu0 0.0
        %1316 = vmatprep.subr.mxu0 0.0
        %1317 = vmatpush2.msra.mxu0 0.0
        %1318 = vmatprep.subr.mxu0 0.0
        %1319 = vmatpush2.msra.mxu0 0.0
        %1320 = vmatprep.subr.mxu0 0.0
        %1321 = vmatpush2.msra.mxu0 0.0
        %1322 = vmatprep.subr.mxu0 0.0
        %1323 = vmatpush2.msra.mxu0 0.0
        %1324 = vmatprep.mubr.f32.mxu0 0.0
        %1325 = vmatmul.mubr.f32.gmra.mxu0 %v1258
        %v1326 = vpop.f32.mrf.mxu0
        %v1327 = vadd.f32 0.0, %v1326
        %v1328 = vpop.f32.mrf.mxu0
        %1329 = vdwg.mxu0
        %1331 = vrot.lane.b32.xlu0 %v1327, 127
        %v1332 = vpop.permute.xlu0 %1331
        %1334 = vst.msk [vmem:[#allocation3] sm:$0xff] %vm1045, %v1332
        %1335 = vrot.lane.b32.xlu0 %v1327, 7
        %v1336 = vpop.permute.xlu0 %1335
        %1338 = vst.msk [vmem:[#allocation3] sm:$0xff] %vm1050, %v1336
        %v1339 = vld [vmem:[#allocation3] sm:$0xff]
        %v1340 = vsel %vm1053, %v1339, %v1327
        %1342 = vrot.lane.b32.xlu0 %v1340, 126
        %v1343 = vpop.permute.xlu0 %1342
        %1345 = vst.msk [vmem:[#allocation3] sm:$0xff] %vm1060, %v1343
        %1346 = vrot.lane.b32.xlu0 %v1340, 6
        %v1347 = vpop.permute.xlu0 %1346
        %1349 = vst.msk [vmem:[#allocation3] sm:$0xff] %vm1065, %v1347
        %v1350 = vld [vmem:[#allocation3] sm:$0xff]
        %v1351 = vsel %vm1068, %v1350, %v1340
        %1353 = vrot.lane.b32.xlu0 %v1351, 124
        %v1354 = vpop.permute.xlu0 %1353
        %1356 = vst.msk [vmem:[#allocation3] sm:$0xff] %vm1075, %v1354
        %1357 = vrot.lane.b32.xlu0 %v1351, 4
        %v1358 = vpop.permute.xlu0 %1357
        %1360 = vst.msk [vmem:[#allocation3] sm:$0xff] %vm1080, %v1358
        %v1361 = vld [vmem:[#allocation3] sm:$0xff]
        %v1362 = vsel %vm1083, %v1361, %v1351
        %v1363 = vsel %vm1086, %v1362, 0.0
        %1364 = vrot.lane.b32.xlu0 %v857, 64
        %v1365 = vpop.permute.xlu0 %1364
        %v1366 = vsel %vm967, %v1365, 0
        %1368 = vmatprep.subr.mxu0 0.0
        %1369 = vmatpush1.xpose.msra.mxu0 0.0
        %1370 = vmatprep.subr.mxu0 0.0
        %1371 = vmatpush1.xpose.msra.mxu0 0.0
        %1372 = vmatprep.subr.mxu0 0.0
        %1373 = vmatpush1.xpose.msra.mxu0 0.0
        %1374 = vmatprep.subr.mxu0 0.0
        %1375 = vmatpush1.xpose.msra.mxu0 0.0
        %1376 = vmatprep.subr.mxu0 0.0
        %1377 = vmatpush1.xpose.msra.mxu0 0.0
        %1378 = vmatprep.subr.mxu0 0.0
        %1379 = vmatpush1.xpose.msra.mxu0 0.0
        %1380 = vmatprep.subr.mxu0 0.0
        %1381 = vmatpush1.xpose.msra.mxu0 0.0
        %1382 = vmatprep.subr.mxu0 0.0
        %1383 = vmatpush1.xpose.msra.mxu0 0.0
        %1384 = vmatprep.subr.mxu0 0.0
        %1385 = vmatpush1.xpose.msra.mxu0 0.0
        %1386 = vmatprep.subr.mxu0 0.0
        %1387 = vmatpush1.xpose.msra.mxu0 0.0
        %1388 = vmatprep.subr.mxu0 0.0
        %1389 = vmatpush1.xpose.msra.mxu0 0.0
        %1390 = vmatprep.subr.mxu0 0.0
        %1391 = vmatpush1.xpose.msra.mxu0 0.0
        %1392 = vmatprep.subr.mxu0 0.0
        %1393 = vmatpush1.xpose.msra.mxu0 0.0
        %1394 = vmatprep.subr.mxu0 0.0
        %1395 = vmatpush1.xpose.msra.mxu0 0.0
        %1396 = vmatprep.subr.mxu0 0.0
        %1397 = vmatpush1.xpose.msra.mxu0 0.0
        %1398 = vmatprep.subr.mxu0 0.0
        %1399 = vmatpush1.xpose.msra.mxu0 %v1366
        %1400 = vmatprep.subr.mxu0 0.0
        %1401 = vmatpush2.xpose.msra.mxu0 0.0
        %1402 = vmatprep.subr.mxu0 0.0
        %1403 = vmatpush2.xpose.msra.mxu0 0.0
        %1404 = vmatprep.subr.mxu0 0.0
        %1405 = vmatpush2.xpose.msra.mxu0 0.0
        %1406 = vmatprep.subr.mxu0 0.0
        %1407 = vmatpush2.xpose.msra.mxu0 0.0
        %1408 = vmatprep.subr.mxu0 0.0
        %1409 = vmatpush2.xpose.msra.mxu0 0.0
        %1410 = vmatprep.subr.mxu0 0.0
        %1411 = vmatpush2.xpose.msra.mxu0 0.0
        %1412 = vmatprep.subr.mxu0 0.0
        %1413 = vmatpush2.xpose.msra.mxu0 0.0
        %1414 = vmatprep.subr.mxu0 0.0
        %1415 = vmatpush2.xpose.msra.mxu0 0.0
        %1416 = vmatprep.subr.mxu0 0.0
        %1417 = vmatpush2.xpose.msra.mxu0 0.0
        %1418 = vmatprep.subr.mxu0 0.0
        %1419 = vmatpush2.xpose.msra.mxu0 0.0
        %1420 = vmatprep.subr.mxu0 0.0
        %1421 = vmatpush2.xpose.msra.mxu0 0.0
        %1422 = vmatprep.subr.mxu0 0.0
        %1423 = vmatpush2.xpose.msra.mxu0 0.0
        %1424 = vmatprep.subr.mxu0 0.0
        %1425 = vmatpush2.xpose.msra.mxu0 0.0
        %1426 = vmatprep.subr.mxu0 0.0
        %1427 = vmatpush2.xpose.msra.mxu0 0.0
        %1428 = vmatprep.subr.mxu0 0.0
        %1429 = vmatpush2.xpose.msra.mxu0 0.0
        %1430 = vmatprep.subr.mxu0 0.0
        %1431 = vmatpush2.xpose.msra.mxu0 0.0
        %1432 = vmatprep.mubr.f32.mxu0 0.0
        %1433 = vmatmul.mubr.f32.gmra.mxu0 %v1258
        %v1434 = vpop.f32.mrf.mxu0
        %v1435 = vadd.f32 %v1363, %v1434
        %v1436 = vpop.f32.mrf.mxu0
        %1437 = vdwg.mxu0
        %v1438 = vsel %vm1161, %v1435, -inf
        %1439 = vmax.xlane.f32.xlu0 %v1438
        %v1440 = vpop.xlane.xlu0 %1439
        %v1441 = vsub.f32 %v1435, %v1440
        %v1442 = vmul.f32 %v1441, 1.442695
        %v1443 = vpow.pop %v1442
        %v1444 = vsel %vm1161, %v1443, 0.0
        %1445 = vadd.xlane.f32.xlu0 %v1444
        %v1446 = vpop.xlane.xlu0 %1445
        %v1447 = vrcp.pop %v1446
        %v1448 = vmul.f32 %v1443, %v1447
        %s1449 = scalar_lea.vmem %s672, 8 [#allocation13]
        %1450 = vst.msk [vmem:[%s1449] sm:$0xff] %vm1161, %v1448
        %1452 = vrot.lane.b32.xlu0 %v950, 64
        %v1453 = vpop.permute.xlu0 %1452
        %v1456 = vsel %vm1161, %v1448, 0
        %1458 = vmatprep.subr.mxu0 0.0
        %1459 = vmatpush1.msra.mxu0 0.0
        %1460 = vmatprep.subr.mxu0 0.0
        %1461 = vmatpush1.msra.mxu0 0.0
        %1462 = vmatprep.subr.mxu0 0.0
        %1463 = vmatpush1.msra.mxu0 0.0
        %1464 = vmatprep.subr.mxu0 0.0
        %1465 = vmatpush1.msra.mxu0 0.0
        %1466 = vmatprep.subr.mxu0 0.0
        %1467 = vmatpush1.msra.mxu0 0.0
        %1468 = vmatprep.subr.mxu0 0.0
        %1469 = vmatpush1.msra.mxu0 0.0
        %1470 = vmatprep.subr.mxu0 0.0
        %1471 = vmatpush1.msra.mxu0 0.0
        %1472 = vmatprep.subr.mxu0 0.0
        %1473 = vmatpush1.msra.mxu0 0.0
        %1474 = vmatprep.subr.mxu0 0.0
        %1475 = vmatpush1.msra.mxu0 0.0
        %1476 = vmatprep.subr.mxu0 0.0
        %1477 = vmatpush1.msra.mxu0 0.0
        %1478 = vmatprep.subr.mxu0 0.0
        %1479 = vmatpush1.msra.mxu0 0.0
        %1480 = vmatprep.subr.mxu0 0.0
        %1481 = vmatpush1.msra.mxu0 0.0
        %1482 = vmatprep.subr.mxu0 0.0
        %1483 = vmatpush1.msra.mxu0 0.0
        %1484 = vmatprep.subr.mxu0 0.0
        %1485 = vmatpush1.msra.mxu0 0.0
        %1486 = vmatprep.subr.mxu0 0.0
        %1487 = vmatpush1.msra.mxu0 0.0
        %1488 = vmatprep.subr.mxu0 0.0
        %1489 = vmatpush1.msra.mxu0 %v1453
        %1490 = vmatprep.subr.mxu0 0.0
        %1491 = vmatpush2.msra.mxu0 0.0
        %1492 = vmatprep.subr.mxu0 0.0
        %1493 = vmatpush2.msra.mxu0 0.0
        %1494 = vmatprep.subr.mxu0 0.0
        %1495 = vmatpush2.msra.mxu0 0.0
        %1496 = vmatprep.subr.mxu0 0.0
        %1497 = vmatpush2.msra.mxu0 0.0
        %1498 = vmatprep.subr.mxu0 0.0
        %1499 = vmatpush2.msra.mxu0 0.0
        %1500 = vmatprep.subr.mxu0 0.0
        %1501 = vmatpush2.msra.mxu0 0.0
        %1502 = vmatprep.subr.mxu0 0.0
        %1503 = vmatpush2.msra.mxu0 0.0
        %1504 = vmatprep.subr.mxu0 0.0
        %1505 = vmatpush2.msra.mxu0 0.0
        %1506 = vmatprep.subr.mxu0 0.0
        %1507 = vmatpush2.msra.mxu0 0.0
        %1508 = vmatprep.subr.mxu0 0.0
        %1509 = vmatpush2.msra.mxu0 0.0
        %1510 = vmatprep.subr.mxu0 0.0
        %1511 = vmatpush2.msra.mxu0 0.0
        %1512 = vmatprep.subr.mxu0 0.0
        %1513 = vmatpush2.msra.mxu0 0.0
        %1514 = vmatprep.subr.mxu0 0.0
        %1515 = vmatpush2.msra.mxu0 0.0
        %1516 = vmatprep.subr.mxu0 0.0
        %1517 = vmatpush2.msra.mxu0 0.0
        %1518 = vmatprep.subr.mxu0 0.0
        %1519 = vmatpush2.msra.mxu0 0.0
        %1520 = vmatprep.subr.mxu0 0.0
        %1521 = vmatpush2.msra.mxu0 0.0
        %1522 = vmatprep.mubr.f32.mxu0 0.0
        %1523 = vmatmul.mubr.f32.gmra.mxu0 %v1456
        %v1524 = vpop.f32.mrf.mxu0
        %v1525 = vadd.f32 0.0, %v1524
        %v1526 = vpop.f32.mrf.mxu0
        %1527 = vdwg.mxu0
        %1529 = vrot.lane.b32.xlu0 %v1525, 64
        %v1530 = vpop.permute.xlu0 %1529
        %vm1532 = vcmask 1048064
        %1533 = vst.msk [vmem:[#allocation2] sm:$0xff] %vm1532, %v1530
        %v1534 = vld [vmem:[#allocation2] sm:$0xff]
        %v1535 = vld [vmem:[#allocation9] sm:$0xff]
        %v1536 = vld [vmem:[#allocation9 + $0x8] sm:$0xff]
        %v1537 = vld [vmem:[#allocation9 + $0x10] sm:$0xff]
        %v1538 = vld [vmem:[#allocation9 + $0x18] sm:$0xff]
        %v1539 = vld [vmem:[#allocation9 + $0x20] sm:$0xff]
        %v1540 = vld [vmem:[#allocation9 + $0x28] sm:$0xff]
        %v1541 = vld [vmem:[#allocation9 + $0x30] sm:$0xff]
        %v1542 = vld [vmem:[#allocation9 + $0x38] sm:$0xff]
        %v1543 = vld [vmem:[#allocation9 + $0x40] sm:$0xff]
        %v1544 = vld [vmem:[#allocation9 + $0x48] sm:$0xff]
        %v1545 = vld [vmem:[#allocation9 + $0x50] sm:$0xff]
        %v1546 = vld [vmem:[#allocation9 + $0x58] sm:$0xff]
        %v1547 = vld [vmem:[#allocation9 + $0x60] sm:$0xff]
        %v1548 = vld [vmem:[#allocation9 + $0x68] sm:$0xff]
        %v1549 = vld [vmem:[#allocation9 + $0x70] sm:$0xff]
        %v1550 = vld [vmem:[#allocation9 + $0x78] sm:$0xff]
        %v1551 = vld [vmem:[%s9] sm:$0x1]
        %v1553 = vlaneseq
        %v1554 = vshrl.u32 %v1553, 7
        %v1555 = vsub.s32 0, %v1554
        %v1556 = vrot.slane %v1551, %v1555
        %1558 = vmatprep.subr.mxu0 0.0
        %1559 = vmatpush1.msra.mxu0 %v1550
        %1560 = vmatprep.subr.mxu0 0.0
        %1561 = vmatpush1.msra.mxu0 %v1549
        %1562 = vmatprep.subr.mxu0 0.0
        %1563 = vmatpush1.msra.mxu0 %v1548
        %1564 = vmatprep.subr.mxu0 0.0
        %1565 = vmatpush1.msra.mxu0 %v1547
        %1566 = vmatprep.subr.mxu0 0.0
        %1567 = vmatpush1.msra.mxu0 %v1546
        %1568 = vmatprep.subr.mxu0 0.0
        %1569 = vmatpush1.msra.mxu0 %v1545
        %1570 = vmatprep.subr.mxu0 0.0
        %1571 = vmatpush1.msra.mxu0 %v1544
        %1572 = vmatprep.subr.mxu0 0.0
        %1573 = vmatpush1.msra.mxu0 %v1543
        %1574 = vmatprep.subr.mxu0 0.0
        %1575 = vmatpush1.msra.mxu0 %v1542
        %1576 = vmatprep.subr.mxu0 0.0
        %1577 = vmatpush1.msra.mxu0 %v1541
        %1578 = vmatprep.subr.mxu0 0.0
        %1579 = vmatpush1.msra.mxu0 %v1540
        %1580 = vmatprep.subr.mxu0 0.0
        %1581 = vmatpush1.msra.mxu0 %v1539
        %1582 = vmatprep.subr.mxu0 0.0
        %1583 = vmatpush1.msra.mxu0 %v1538
        %1584 = vmatprep.subr.mxu0 0.0
        %1585 = vmatpush1.msra.mxu0 %v1537
        %1586 = vmatprep.subr.mxu0 0.0
        %1587 = vmatpush1.msra.mxu0 %v1536
        %1588 = vmatprep.subr.mxu0 0.0
        %1589 = vmatpush1.msra.mxu0 %v1535
        %1590 = vmatprep.subr.mxu0 0.0
        %1591 = vmatpush2.msra.mxu0 0.0
        %1592 = vmatprep.subr.mxu0 0.0
        %1593 = vmatpush2.msra.mxu0 0.0
        %1594 = vmatprep.subr.mxu0 0.0
        %1595 = vmatpush2.msra.mxu0 0.0
        %1596 = vmatprep.subr.mxu0 0.0
        %1597 = vmatpush2.msra.mxu0 0.0
        %1598 = vmatprep.subr.mxu0 0.0
        %1599 = vmatpush2.msra.mxu0 0.0
        %1600 = vmatprep.subr.mxu0 0.0
        %1601 = vmatpush2.msra.mxu0 0.0
        %1602 = vmatprep.subr.mxu0 0.0
        %1603 = vmatpush2.msra.mxu0 0.0
        %1604 = vmatprep.subr.mxu0 0.0
        %1605 = vmatpush2.msra.mxu0 0.0
        %1606 = vmatprep.subr.mxu0 0.0
        %1607 = vmatpush2.msra.mxu0 0.0
        %1608 = vmatprep.subr.mxu0 0.0
        %1609 = vmatpush2.msra.mxu0 0.0
        %1610 = vmatprep.subr.mxu0 0.0
        %1611 = vmatpush2.msra.mxu0 0.0
        %1612 = vmatprep.subr.mxu0 0.0
        %1613 = vmatpush2.msra.mxu0 0.0
        %1614 = vmatprep.subr.mxu0 0.0
        %1615 = vmatpush2.msra.mxu0 0.0
        %1616 = vmatprep.subr.mxu0 0.0
        %1617 = vmatpush2.msra.mxu0 0.0
        %1618 = vmatprep.subr.mxu0 0.0
        %1619 = vmatpush2.msra.mxu0 0.0
        %1620 = vmatprep.subr.mxu0 0.0
        %1621 = vmatpush2.msra.mxu0 0.0
        %1622 = vmatprep.mubr.f32.mxu0 0.0
        %1623 = vmatmul.mubr.f32.gmra.mxu0 %v1534
        %v1624 = vpop.f32.mrf.mxu0
        %v1625 = vadd.f32 %v1556, %v1624
        %v1626 = vpop.f32.mrf.mxu0
        %1627 = vdwg.mxu0
        %v1628 = vadd.f32 %v1625, %v673
        %v1629 = vld [vmem:[%s14] sm:$0x1]
        %v1630 = vld [vmem:[%s15] sm:$0x1]
        %1631 = vadd.xlane.f32.xlu0 %v1628
        %v1632 = vpop.xlane.xlu0 %1631
        %v1633 = vrcp.pop 128.0
        %v1634 = vmul.f32 %v1632, %v1633
        %v1635 = vsub.f32 %v1628, %v1634
        %v1636 = vmul.f32 %v1635, %v1635
        %1637 = vadd.xlane.f32.xlu0 %v1636
        %v1638 = vpop.xlane.xlu0 %1637
        %v1639 = vmul.f32 %v1638, %v1633
        %v1640 = vadd.f32 %v1639, 1e-06
        %v1641 = vrsqrt.pop %v1640
        %v1642 = vmul.f32 %v1635, %v1641
        %v1644 = vlaneseq
        %v1645 = vshrl.u32 %v1644, 7
        %v1646 = vsub.s32 0, %v1645
        %v1647 = vrot.slane %v1629, %v1646
        %v1649 = vmul.f32 %v1642, %v1647
        %v1651 = vlaneseq
        %v1652 = vshrl.u32 %v1651, 7
        %v1653 = vsub.s32 0, %v1652
        %v1654 = vrot.slane %v1630, %v1653
        %v1656 = vadd.f32 %v1649, %v1654
        %v1657 = vld [vmem:[%s10] sm:$0xff]
        %v1658 = vld [vmem:[%s10 + $0x8] sm:$0xff]
        %v1659 = vld [vmem:[%s10 + $0x10] sm:$0xff]
        %v1660 = vld [vmem:[%s10 + $0x18] sm:$0xff]
        %v1661 = vld [vmem:[%s10 + $0x20] sm:$0xff]
        %v1662 = vld [vmem:[%s10 + $0x28] sm:$0xff]
        %v1663 = vld [vmem:[%s10 + $0x30] sm:$0xff]
        %v1664 = vld [vmem:[%s10 + $0x38] sm:$0xff]
        %v1665 = vld [vmem:[%s10 + $0x40] sm:$0xff]
        %v1666 = vld [vmem:[%s10 + $0x48] sm:$0xff]
        %v1667 = vld [vmem:[%s10 + $0x50] sm:$0xff]
        %v1668 = vld [vmem:[%s10 + $0x58] sm:$0xff]
        %v1669 = vld [vmem:[%s10 + $0x60] sm:$0xff]
        %v1670 = vld [vmem:[%s10 + $0x68] sm:$0xff]
        %v1671 = vld [vmem:[%s10 + $0x70] sm:$0xff]
        %v1672 = vld [vmem:[%s10 + $0x78] sm:$0xff]
        %v1673 = vld [vmem:[%s11] sm:$0x1]
        %v1675 = vlaneseq
        %v1676 = vshrl.u32 %v1675, 7
        %v1677 = vsub.s32 0, %v1676
        %v1678 = vrot.slane %v1673, %v1677
        %1680 = vmatprep.subr.mxu0 0.0
        %1681 = vmatpush1.msra.mxu0 %v1672
        %1682 = vmatprep.subr.mxu0 0.0
        %1683 = vmatpush1.msra.mxu0 %v1671
        %1684 = vmatprep.subr.mxu0 0.0
        %1685 = vmatpush1.msra.mxu0 %v1670
        %1686 = vmatprep.subr.mxu0 0.0
        %1687 = vmatpush1.msra.mxu0 %v1669
        %1688 = vmatprep.subr.mxu0 0.0
        %1689 = vmatpush1.msra.mxu0 %v1668
        %1690 = vmatprep.subr.mxu0 0.0
        %1691 = vmatpush1.msra.mxu0 %v1667
        %1692 = vmatprep.subr.mxu0 0.0
        %1693 = vmatpush1.msra.mxu0 %v1666
        %1694 = vmatprep.subr.mxu0 0.0
        %1695 = vmatpush1.msra.mxu0 %v1665
        %1696 = vmatprep.subr.mxu0 0.0
        %1697 = vmatpush1.msra.mxu0 %v1664
        %1698 = vmatprep.subr.mxu0 0.0
        %1699 = vmatpush1.msra.mxu0 %v1663
        %1700 = vmatprep.subr.mxu0 0.0
        %1701 = vmatpush1.msra.mxu0 %v1662
        %1702 = vmatprep.subr.mxu0 0.0
        %1703 = vmatpush1.msra.mxu0 %v1661
        %1704 = vmatprep.subr.mxu0 0.0
        %1705 = vmatpush1.msra.mxu0 %v1660
        %1706 = vmatprep.subr.mxu0 0.0
        %1707 = vmatpush1.msra.mxu0 %v1659
        %1708 = vmatprep.subr.mxu0 0.0
        %1709 = vmatpush1.msra.mxu0 %v1658
        %1710 = vmatprep.subr.mxu0 0.0
        %1711 = vmatpush1.msra.mxu0 %v1657
        %1712 = vmatprep.subr.mxu0 0.0
        %1713 = vmatpush2.msra.mxu0 0.0
        %1714 = vmatprep.subr.mxu0 0.0
        %1715 = vmatpush2.msra.mxu0 0.0
        %1716 = vmatprep.subr.mxu0 0.0
        %1717 = vmatpush2.msra.mxu0 0.0
        %1718 = vmatprep.subr.mxu0 0.0
        %1719 = vmatpush2.msra.mxu0 0.0
        %1720 = vmatprep.subr.mxu0 0.0
        %1721 = vmatpush2.msra.mxu0 0.0
        %1722 = vmatprep.subr.mxu0 0.0
        %1723 = vmatpush2.msra.mxu0 0.0
        %1724 = vmatprep.subr.mxu0 0.0
        %1725 = vmatpush2.msra.mxu0 0.0
        %1726 = vmatprep.subr.mxu0 0.0
        %1727 = vmatpush2.msra.mxu0 0.0
        %1728 = vmatprep.subr.mxu0 0.0
        %1729 = vmatpush2.msra.mxu0 0.0
        %1730 = vmatprep.subr.mxu0 0.0
        %1731 = vmatpush2.msra.mxu0 0.0
        %1732 = vmatprep.subr.mxu0 0.0
        %1733 = vmatpush2.msra.mxu0 0.0
        %1734 = vmatprep.subr.mxu0 0.0
        %1735 = vmatpush2.msra.mxu0 0.0
        %1736 = vmatprep.subr.mxu0 0.0
        %1737 = vmatpush2.msra.mxu0 0.0
        %1738 = vmatprep.subr.mxu0 0.0
        %1739 = vmatpush2.msra.mxu0 0.0
        %1740 = vmatprep.subr.mxu0 0.0
        %1741 = vmatpush2.msra.mxu0 0.0
        %1742 = vmatprep.subr.mxu0 0.0
        %1743 = vmatpush2.msra.mxu0 0.0
        %1744 = vmatprep.mubr.f32.mxu0 0.0
        %1745 = vmatmul.mubr.f32.gmra.mxu0 %v1656
        %v1746 = vpop.f32.mrf.mxu0
        %v1747 = vadd.f32 %v1678, %v1746
        %v1748 = vpop.f32.mrf.mxu0
        %1749 = vdwg.mxu0
        %v1750 = vmax.f32 %v1747, 0.0
        %v1751 = vld [vmem:[#allocation10] sm:$0xff]
        %v1752 = vld [vmem:[#allocation10 + $0x8] sm:$0xff]
        %v1753 = vld [vmem:[#allocation10 + $0x10] sm:$0xff]
        %v1754 = vld [vmem:[#allocation10 + $0x18] sm:$0xff]
        %v1755 = vld [vmem:[#allocation10 + $0x20] sm:$0xff]
        %v1756 = vld [vmem:[#allocation10 + $0x28] sm:$0xff]
        %v1757 = vld [vmem:[#allocation10 + $0x30] sm:$0xff]
        %v1758 = vld [vmem:[#allocation10 + $0x38] sm:$0xff]
        %v1759 = vld [vmem:[%s13] sm:$0x1]
        %v1761 = vlaneseq
        %v1762 = vshrl.u32 %v1761, 7
        %v1763 = vsub.s32 0, %v1762
        %v1764 = vrot.slane %v1759, %v1763
        %v1767 = vsel %vm967, %v1750, 0
        %1769 = vmatprep.subr.mxu0 0.0
        %1770 = vmatpush1.msra.mxu0 0.0
        %1771 = vmatprep.subr.mxu0 0.0
        %1772 = vmatpush1.msra.mxu0 0.0
        %1773 = vmatprep.subr.mxu0 0.0
        %1774 = vmatpush1.msra.mxu0 0.0
        %1775 = vmatprep.subr.mxu0 0.0
        %1776 = vmatpush1.msra.mxu0 0.0
        %1777 = vmatprep.subr.mxu0 0.0
        %1778 = vmatpush1.msra.mxu0 0.0
        %1779 = vmatprep.subr.mxu0 0.0
        %1780 = vmatpush1.msra.mxu0 0.0
        %1781 = vmatprep.subr.mxu0 0.0
        %1782 = vmatpush1.msra.mxu0 0.0
        %1783 = vmatprep.subr.mxu0 0.0
        %1784 = vmatpush1.msra.mxu0 0.0
        %1785 = vmatprep.subr.mxu0 0.0
        %1786 = vmatpush1.msra.mxu0 %v1758
        %1787 = vmatprep.subr.mxu0 0.0
        %1788 = vmatpush1.msra.mxu0 %v1757
        %1789 = vmatprep.subr.mxu0 0.0
        %1790 = vmatpush1.msra.mxu0 %v1756
        %1791 = vmatprep.subr.mxu0 0.0
        %1792 = vmatpush1.msra.mxu0 %v1755
        %1793 = vmatprep.subr.mxu0 0.0
        %1794 = vmatpush1.msra.mxu0 %v1754
        %1795 = vmatprep.subr.mxu0 0.0
        %1796 = vmatpush1.msra.mxu0 %v1753
        %1797 = vmatprep.subr.mxu0 0.0
        %1798 = vmatpush1.msra.mxu0 %v1752
        %1799 = vmatprep.subr.mxu0 0.0
        %1800 = vmatpush1.msra.mxu0 %v1751
        %1801 = vmatprep.subr.mxu0 0.0
        %1802 = vmatpush2.msra.mxu0 0.0
        %1803 = vmatprep.subr.mxu0 0.0
        %1804 = vmatpush2.msra.mxu0 0.0
        %1805 = vmatprep.subr.mxu0 0.0
        %1806 = vmatpush2.msra.mxu0 0.0
        %1807 = vmatprep.subr.mxu0 0.0
        %1808 = vmatpush2.msra.mxu0 0.0
        %1809 = vmatprep.subr.mxu0 0.0
        %1810 = vmatpush2.msra.mxu0 0.0
        %1811 = vmatprep.subr.mxu0 0.0
        %1812 = vmatpush2.msra.mxu0 0.0
        %1813 = vmatprep.subr.mxu0 0.0
        %1814 = vmatpush2.msra.mxu0 0.0
        %1815 = vmatprep.subr.mxu0 0.0
        %1816 = vmatpush2.msra.mxu0 0.0
        %1817 = vmatprep.subr.mxu0 0.0
        %1818 = vmatpush2.msra.mxu0 0.0
        %1819 = vmatprep.subr.mxu0 0.0
        %1820 = vmatpush2.msra.mxu0 0.0
        %1821 = vmatprep.subr.mxu0 0.0
        %1822 = vmatpush2.msra.mxu0 0.0
        %1823 = vmatprep.subr.mxu0 0.0
        %1824 = vmatpush2.msra.mxu0 0.0
        %1825 = vmatprep.subr.mxu0 0.0
        %1826 = vmatpush2.msra.mxu0 0.0
        %1827 = vmatprep.subr.mxu0 0.0
        %1828 = vmatpush2.msra.mxu0 0.0
        %1829 = vmatprep.subr.mxu0 0.0
        %1830 = vmatpush2.msra.mxu0 0.0
        %1831 = vmatprep.subr.mxu0 0.0
        %1832 = vmatpush2.msra.mxu0 0.0
        %1833 = vmatprep.mubr.f32.mxu0 0.0
        %1834 = vmatmul.mubr.f32.gmra.mxu0 %v1767
        %v1835 = vpop.f32.mrf.mxu0
        %v1836 = vadd.f32 %v1764, %v1835
        %v1837 = vpop.f32.mrf.mxu0
        %1838 = vdwg.mxu0
        %v1839 = vadd.f32 %v1656, %v1836
        %v1840 = vld [vmem:[%s16] sm:$0x1]
        %v1841 = vld [vmem:[%s17] sm:$0x1]
        %1842 = vadd.xlane.f32.xlu0 %v1839
        %v1843 = vpop.xlane.xlu0 %1842
        %v1844 = vmul.f32 %v1843, %v1633
        %v1845 = vsub.f32 %v1839, %v1844
        %v1846 = vmul.f32 %v1845, %v1845
        %1847 = vadd.xlane.f32.xlu0 %v1846
        %v1848 = vpop.xlane.xlu0 %1847
        %v1849 = vmul.f32 %v1848, %v1633
        %v1850 = vadd.f32 %v1849, 1e-06
        %v1851 = vrsqrt.pop %v1850
        %v1852 = vmul.f32 %v1845, %v1851
        %v1854 = vlaneseq
        %v1855 = vshrl.u32 %v1854, 7
        %v1856 = vsub.s32 0, %v1855
        %v1857 = vrot.slane %v1840, %v1856
        %v1859 = vmul.f32 %v1852, %v1857
        %v1861 = vlaneseq
        %v1862 = vshrl.u32 %v1861, 7
        %v1863 = vsub.s32 0, %v1862
        %v1864 = vrot.slane %v1841, %v1863
        %v1866 = vadd.f32 %v1859, %v1864
        %1867 = vst [vmem:[%s665] sm:$0xff] %v1866
        %s1868 = sand.u32 %s433, 1
        %s1869 = scalar_lea.sflag [#allocation6], %s1868
        %s1870 = sand.u32 %s433, 1
        %s1871 = smul.addr %s1870, 8
        %s1872 = scalar_lea.vmem [#allocation12], %s1871
        %s1873 = sand.u32 %s459, 1
        %s1874 = scalar_lea.sflag [#allocation14], %s1873
        %s1875 = sand.u32 %s459, 1
        %s1876 = smul.addr %s1875, 16
        %s1877 = scalar_lea.vmem [#allocation13], %s1876
        // Predicated region
        $region109: #{tpu_custom_call.1} parent=91 // pred_check
          %p1878 = pneg %p443
        $region110: #{tpu_custom_call.1} parent=91 // pred_check_branch
          %1880 = sbr.rel (%p1878) target = $region112
        $region111: #{tpu_custom_call.1} parent=91 // pred_region
          %s1882 = ssub.s32 128, 128
          %1883 = vsyncadd %s1869, %s1882
          %s1884 = smul.addr %s42, 128
          %s1885 = scalar_lea.hbm %s18, %s1884
          %s1887 = sshll.u32 %s1872, 4
          %s1888 = int_to_ptr.vmem [resolvable:$true] %s1887
          %1890 = dma.vmem_to_hbm [thread:$0]  %s1888, 128, %s1885, %s1869
        $region112: #{tpu_custom_call.1} parent=91 // pred_fallthru
          _
        // Predicated region
        $region113: #{tpu_custom_call.1} parent=91 // pred_check
          %p1891 = pneg %p469
        $region114: #{tpu_custom_call.1} parent=91 // pred_check_branch
          %1893 = sbr.rel (%p1891) target = $region116
        $region115: #{tpu_custom_call.1} parent=91 // pred_region
          %s1895 = ssub.s32 256, 256
          %1896 = vsyncadd %s1874, %s1895
          %s1897 = smul.addr %s42, 2
          %s1898 = smul.addr %s1897, 128
          %s1899 = scalar_lea.hbm %s19, %s1898
          %s1900 = sshll.u32 %s1877, 4
          %s1901 = int_to_ptr.vmem [resolvable:$true] %s1900
          %1906 = dma.vmem_to_hbm [thread:$0]  %s1901, 256, %s1899, %s1874, 128, 128, 8
        $region116: #{tpu_custom_call.1} parent=91 // pred_fallthru
          _
      $region92: #{tpu_custom_call.1} parent=5 // pred_fallthru
        _
      %p1907 = scmp.le.s32.totalorder 2, %s37
      // Predicated region
      $region117: #{tpu_custom_call.1} parent=5 // pred_check
        %p1908 = pneg %p1907
      $region118: #{tpu_custom_call.1} parent=5 // pred_check_branch
        %1910 = sbr.rel (%p1908) target = $region120
      $region119: #{tpu_custom_call.1} parent=5 // pred_region
        %s1911 = ssub.s32 %s37, 2
        // Predicated region
        $region121: #{tpu_custom_call.1} parent=119 // pred_check
          %p1912 = pneg %p449
        $region122: #{tpu_custom_call.1} parent=119 // pred_check_branch
          %1914 = sbr.rel (%p1912) target = $region124
        $region123: #{tpu_custom_call.1} parent=119 // pred_region
          %s1915 = sand.u32 %s434, 1
          %s1916 = scalar_lea.sflag [#allocation6], %s1915
          %s1917 = sand.u32 %s434, 1
          %s1918 = smul.addr %s1917, 8
          %s1919 = scalar_lea.vmem [#allocation12], %s1918
          %1920 = dma.done %s1916, 128
        $region124: #{tpu_custom_call.1} parent=119 // pred_fallthru
          _
        // Predicated region
        $region125: #{tpu_custom_call.1} parent=119 // pred_check
          %p1921 = pneg %p475
        $region126: #{tpu_custom_call.1} parent=119 // pred_check_branch
          %1923 = sbr.rel (%p1921) target = $region128
        $region127: #{tpu_custom_call.1} parent=119 // pred_region
          %s1924 = sand.u32 %s460, 1
          %s1925 = scalar_lea.sflag [#allocation14], %s1924
          %s1926 = sand.u32 %s460, 1
          %s1927 = smul.addr %s1926, 16
          %s1928 = scalar_lea.vmem [#allocation13], %s1927
          %1929 = dma.done %s1925, 256
        $region128: #{tpu_custom_call.1} parent=119 // pred_fallthru
          _
      $region120: #{tpu_custom_call.1} parent=5 // pred_fallthru
        _
    $region6: #{tpu_custom_call.1} parent=1 // loop_footer
      %s41 = sadd.s32 1, %s37
    $region7: #{tpu_custom_call.1} parent=1 // loop_footer_branch
      %36 = sbr.rel target = $region3
    $region8: #{tpu_custom_call.1} parent=1 // loop_exit
      _
    %1930 = vsyncpa [#allocation5], 1
    %s1931 = scalar_lea.sflag [#allocation5], 1
    %1932 = vsyncpa %s1931, 1
    %1933 = vsyncpa [#allocation8], 1
    %1934 = vsyncpa [#allocation11], 1
    %1935 = vsyncpa [#allocation6], 1
    %s1936 = scalar_lea.sflag [#allocation6], 1
    %1937 = vsyncpa %s1936, 1
    %1938 = vsyncpa [#allocation14], 1
    %s1939 = scalar_lea.sflag [#allocation14], 1
    %1940 = vsyncpa %s1939, 1

</llo_original>
